<compile_context>
chip_gen: v5e
topology: v5e:2x2
jax: 0.10.0
libtpu: 0.0.40
codegen_flags: <defaults>
</compile_context>

<pallas_src>
import functools

import jax
import jax.numpy as jnp
from jax.experimental import pallas as pl
from jax.experimental.pallas import tpu as pltpu


# ----------------------------------------------------------------------------- helpers

def _layer_norm(y, w, b, eps=1e-5):
    mu = jnp.mean(y, axis=-1, keepdims=True)
    var = jnp.mean(jnp.square(y - mu), axis=-1, keepdims=True)
    return (y - mu) * jax.lax.rsqrt(var + eps) * w + b


# ----------------------------------------------------------------------------- fused kernel

def _fft_stack_kernel(
        x_ref, pos_ref, mq_ref, mk_ref, pt_ref,
        qkvw_ref, qkvb_ref, ow_ref, ln1w_ref, ln1b_ref,
        c1w_ref, c1b_ref, c2w_ref, c2b_ref, ln2w_ref, ln2b_ref,
        dw_ref, db_ref,
        out_ref,
        act_ref,
        *, B, T, n_head, d_head, kernel_size):
    """One grid step == one TransformerLayer; activation lives in `act_ref`."""
    f32 = jnp.float32
    layer = pl.program_id(0)
    n_layer = pl.num_programs(0)
    BT = B * T
    HD = n_head * d_head
    scale = 1.0 / (d_head ** 0.5)
    pad = kernel_size // 2

    mq = mq_ref[...]          # (B*T, 1)  1.0 = valid row, 0.0 = padded
    mk = mk_ref[...]          # (B, 1, T) key mask

    # --- first step: fold in the positional embedding (out = inp + pos_emb*mask) ---
    @pl.when(layer == 0)
    def _():
        act_ref[...] = x_ref[...] + pos_ref[...] * mq

    x2 = act_ref[...]         # (B*T, D), f32, VMEM-resident across layers

    # ---------------- MultiHeadAttn (post-LN) ----------------
    # one full-batch QKV matmul; bias added once.
    qkv = jnp.dot(x2, qkvw_ref[0], preferred_element_type=f32) + qkvb_ref[0]

    heads = []
    for h in range(n_head):
        q_h = qkv[:, h * d_head:(h + 1) * d_head].reshape(B, T, d_head)
        k_h = qkv[:, HD + h * d_head:HD + (h + 1) * d_head].reshape(B, T, d_head)
        v_h = qkv[:, 2 * HD + h * d_head:2 * HD + (h + 1) * d_head].reshape(B, T, d_head)
        s = jnp.einsum('bqd,bkd->bqk', q_h, k_h, preferred_element_type=f32) * scale
        s = jnp.where(mk > 0.5, s, -1e30)              # masked_fill over keys
        s = s - jnp.max(s, axis=-1, keepdims=True)
        p = jnp.exp(s)
        # EUP reciprocal instead of a VALU divide.  (Fully-masked rows become a
        # uniform distribution instead of NaN; they are zeroed by `* mq` below.)
        p = p * pl.reciprocal(jnp.sum(p, axis=-1, keepdims=True), approx=True)
        pv = jnp.einsum('bqk,bkd->bqd', p, v_h, preferred_element_type=f32)
        heads.append(pv.reshape(BT, d_head))
    attn_vec = heads[0] if n_head == 1 else jnp.concatenate(heads, axis=-1)

    # single o_net matmul on the concatenated heads for the whole batch
    attn_out = jnp.dot(attn_vec, ow_ref[0], preferred_element_type=f32)
    a = _layer_norm(x2 + attn_out, ln1w_ref[0], ln1b_ref[0]) * mq   # output *= mask

    # ---------------- PositionwiseConvFF (post-LN) ----------------
    pt = pt_ref[...]          # (B*T, 1) position-within-sequence (float)

    def same_pad_conv(src, w_ref):
        # "same"-padded Conv1d over the time axis of every batch element,
        # expressed as K shifted full-batch matmuls.  pltpu.roll (XLU sublane
        # rotate, non-negative cyclic shift) + a static row-validity mask
        # replaces zero-pad + concatenate; the mask zeroes both the cyclic
        # wrap-around rows and any leakage across batch boundaries in the
        # flattened (B*T, D) layout.
        acc = jnp.dot(src, w_ref[0, pad], preferred_element_type=f32)
        for j in range(kernel_size):
            off = j - pad
            if off == 0:
                continue
            # want shifted[r] = src[r + off]  ==  roll by (-off) mod BT (cyclic)
            shifted = pltpu.roll(src, (-off) % BT, 0)
            valid = jnp.logical_and(pt + off >= 0.0, pt + off < float(T))
            shifted = jnp.where(valid, shifted, 0.0)
            acc = acc + jnp.dot(shifted, w_ref[0, j], preferred_element_type=f32)
        return acc

    h1 = jnp.maximum(same_pad_conv(a, c1w_ref) + c1b_ref[0], 0.0)    # Conv1d + ReLU
    core = same_pad_conv(h1, c2w_ref) + c2b_ref[0]                   # Conv1d
    new_act = _layer_norm(a + core, ln2w_ref[0], ln2b_ref[0]) * mq   # output *= mask
    act_ref[...] = new_act

    # ---------------- final dense, only on the last layer step ----------------
    @pl.when(layer == n_layer - 1)
    def _():
        out_ref[...] = (jnp.dot(new_act, dw_ref[...], preferred_element_type=f32)
                        + db_ref[...]).astype(out_ref.dtype)


# ----------------------------------------------------------------------------- wrapper

def _const_spec(shape):
    n = len(shape)
    return pl.BlockSpec(tuple(shape), lambda l, _n=n: (0,) * _n)


def _layer_spec(shape):
    tail = tuple(shape[1:])
    n = len(tail)
    return pl.BlockSpec((1,) + tail, lambda l, _n=n: (l,) + (0,) * _n)


def fftransformer_forward(dec_inp, in_lens, params, *, n_head, d_head, d_inner,
                          kernel_size):
    # dec_inp: (B, in_dim, T) NCL  ->  flattened (B*T, D) with D on lanes.
    x = jnp.transpose(dec_inp, (0, 2, 1)).astype(jnp.float32)        # (B, T, D)
    B, T, D = x.shape
    out_dim = params["dense_w"].shape[1]
    n_layers = params["qkv_w"].shape[0]
    assert params["conv1_w"].shape[-1] == d_inner

    # get_mask_from_lengths
    mask = (jnp.arange(T)[None, :] < in_lens[:, None]).astype(jnp.float32)  # (B, T)
    mask_q = mask.reshape(B * T, 1)                  # per-row output mask
    mask_k = mask.reshape(B, 1, T)                   # per-key attention mask
    pos_t = jnp.tile(jnp.arange(T, dtype=jnp.float32), B).reshape(B * T, 1)

    # PositionalEmbedding table (weight-like, computed once outside the kernel)
    pos = jnp.arange(T, dtype=jnp.float32)
    inv_freq = 1.0 / (10000.0 ** (jnp.arange(0.0, D, 2.0, dtype=jnp.float32) / D))
    sinusoid = pos[:, None] * inv_freq[None, :]
    pos_emb = jnp.concatenate([jnp.sin(sinusoid), jnp.cos(sinusoid)], axis=1)  # (T, D)
    pos2 = jnp.tile(pos_emb, (B, 1))                 # (B*T, D)

    x2 = x.reshape(B * T, D)

    kern = functools.partial(_fft_stack_kernel, B=B, T=T, n_head=n_head,
                             d_head=d_head, kernel_size=kernel_size)

    in_specs = [
        _const_spec((B * T, D)),                     # x2
        _const_spec((B * T, D)),                     # pos2
        _const_spec((B * T, 1)),                     # mask_q
        _const_spec((B, 1, T)),                      # mask_k
        _const_spec((B * T, 1)),                     # pos_t
        _layer_spec(params["qkv_w"].shape),
        _layer_spec(params["qkv_b"].shape),
        _layer_spec(params["o_w"].shape),
        _layer_spec(params["ln1_w"].shape),
        _layer_spec(params["ln1_b"].shape),
        _layer_spec(params["conv1_w"].shape),
        _layer_spec(params["conv1_b"].shape),
        _layer_spec(params["conv2_w"].shape),
        _layer_spec(params["conv2_b"].shape),
        _layer_spec(params["ln2_w"].shape),
        _layer_spec(params["ln2_b"].shape),
        _const_spec(params["dense_w"].shape),
        _const_spec(params["dense_b"].shape),
    ]

    # TODO(synk): adapter-mixin branch (is_adapter_available) and the
    # ConditionalLayerNorm conditioning input are external to this module
    # snippet and treated as disabled (condition_types=[] -> plain LayerNorm).
    out2 = pl.pallas_call(
        kern,
        out_shape=jax.ShapeDtypeStruct((B * T, out_dim), jnp.float32),
        grid=(n_layers,),                            # sequential layer loop
        in_specs=in_specs,
        out_specs=_const_spec((B * T, out_dim)),
        scratch_shapes=[pltpu.VMEM((B * T, D), jnp.float32)],   # resident activation
        compiler_params=pltpu.CompilerParams(
            dimension_semantics=("arbitrary",)),     # layers carry state -> sequential
    )(x2, pos2, mask_q, mask_k, pos_t,
      params["qkv_w"], params["qkv_b"], params["o_w"],
      params["ln1_w"], params["ln1_b"],
      params["conv1_w"], params["conv1_b"],
      params["conv2_w"], params["conv2_b"],
      params["ln2_w"], params["ln2_b"],
      params["dense_w"], params["dense_b"])

    # (B*T, out_dim) -> (B, out_dim, T) NCL, matching the PyTorch module output.
    return jnp.transpose(out2.reshape(B, T, out_dim), (0, 2, 1))


# ----------------------------------------------------------------------------- params

def init_params(key, *, in_dim, out_dim, n_layers, n_head, d_head, d_inner,
                kernel_size):
    """Weights in kernel-friendly (pre-transposed, layer-stacked) layout.

    Mapping from the PyTorch module (per layer l):
      qkv_w[l]   = qkv_net.weight.T                    (in_dim, 3*n_head*d_head)
      qkv_b[l]   = qkv_net.bias[None, :]               (1, 3*n_head*d_head)
      o_w[l]     = o_net.weight.T                      (n_head*d_head, in_dim)  [no bias]
      conv1_w[l] = CoreNet[0].weight.permute(2, 1, 0)  (K, in_dim, d_inner)
      conv2_w[l] = CoreNet[2].weight.permute(2, 1, 0)  (K, d_inner, in_dim)
      dense_w    = dense.weight.T                      (in_dim, out_dim)
    """
    hd = n_head * d_head
    L = n_layers

    def nrm(k, shape, scale=0.02):
        return (scale * jax.random.normal(k, shape)).astype(jnp.float32)

    k = jax.random.split(key, 7)
    return {
        "qkv_w": nrm(k[0], (L, in_dim, 3 * hd)),
        "qkv_b": nrm(k[1], (L, 1, 3 * hd)),
        "o_w":   nrm(k[2], (L, hd, in_dim)),
        "ln1_w": jnp.ones((L, 1, in_dim), jnp.float32),
        "ln1_b": jnp.zeros((L, 1, in_dim), jnp.float32),
        "conv1_w": nrm(k[3], (L, kernel_size, in_dim, d_inner)),
        "conv1_b": nrm(k[4], (L, 1, d_inner)),
        "conv2_w": nrm(k[5], (L, kernel_size, d_inner, in_dim)),
        "conv2_b": jnp.zeros((L, 1, in_dim), jnp.float32),
        "ln2_w": jnp.ones((L, 1, in_dim), jnp.float32),
        "ln2_b": jnp.zeros((L, 1, in_dim), jnp.float32),
        "dense_w": nrm(k[6], (in_dim, out_dim)),
        "dense_b": jnp.zeros((1, out_dim), jnp.float32),
    }


# ----------------------------------------------------------------------------- main

if __name__ == "__main__":
    # Small configuration consistent with FFTransformer.__init__
    B, T = 2, 16
    in_dim, out_dim = 32, 1
    n_layers, n_head, d_head = 2, 2, 16
    d_inner, kernel_size = 64, 3

    key = jax.random.PRNGKey(0)
    k_inp, k_par = jax.random.split(key)

    dec_inp = jax.random.normal(k_inp, (B, in_dim, T), jnp.float32)   # (B, C, T) NCL
    in_lens = jnp.array([16, 11], dtype=jnp.int32)

    params = init_params(k_par, in_dim=in_dim, out_dim=out_dim, n_layers=n_layers,
                         n_head=n_head, d_head=d_head, d_inner=d_inner,
                         kernel_size=kernel_size)

    fwd = jax.jit(functools.partial(fftransformer_forward, n_head=n_head,
                                    d_head=d_head, d_inner=d_inner,
                                    kernel_size=kernel_size))
    out = jax.block_until_ready(fwd(dec_inp, in_lens, params))
    assert out.shape == (B, out_dim, T), out.shape
    assert bool(jnp.all(jnp.isfinite(out)))
    print("KERNEL_OK")
</pallas_src>

<mosaic_0001>
module attributes {stable_mosaic.version = 11 : i64} {
  func.func @_fft_stack_kernel(%arg0: i32, %arg1: memref<32x32xf32, #tpu.memory_space<vmem>>, %arg2: memref<32x32xf32, #tpu.memory_space<vmem>>, %arg3: memref<32x1xf32, #tpu.memory_space<vmem>>, %arg4: memref<2x1x16xf32, #tpu.memory_space<vmem>>, %arg5: memref<32x1xf32, #tpu.memory_space<vmem>>, %arg6: memref<1x32x96xf32, #tpu.memory_space<vmem>>, %arg7: memref<1x1x96xf32, #tpu.memory_space<vmem>>, %arg8: memref<1x32x32xf32, #tpu.memory_space<vmem>>, %arg9: memref<1x1x32xf32, #tpu.memory_space<vmem>>, %arg10: memref<1x1x32xf32, #tpu.memory_space<vmem>>, %arg11: memref<1x3x32x64xf32, #tpu.memory_space<vmem>>, %arg12: memref<1x1x64xf32, #tpu.memory_space<vmem>>, %arg13: memref<1x3x64x32xf32, #tpu.memory_space<vmem>>, %arg14: memref<1x1x32xf32, #tpu.memory_space<vmem>>, %arg15: memref<1x1x32xf32, #tpu.memory_space<vmem>>, %arg16: memref<1x1x32xf32, #tpu.memory_space<vmem>>, %arg17: memref<32x1xf32, #tpu.memory_space<vmem>>, %arg18: memref<1x1xf32, #tpu.memory_space<vmem>>, %arg19: memref<32x1xf32, #tpu.memory_space<vmem>>, %arg20: memref<32x32xf32, #tpu.memory_space<vmem>>) attributes {dimension_semantics = [#tpu.dimension_semantics<arbitrary>], iteration_bounds = array<i64: 2>, scalar_prefetch = 0 : i64, scratch_operands = 1 : i64, tpu.core_type = #tpu.core_type<tc>, window_params = [{pipeline_mode = #tpu.pipeline_mode<synchronous>, transform_indices = @transform_0, window_bounds = array<i64: 32, 32>}, {pipeline_mode = #tpu.pipeline_mode<synchronous>, transform_indices = @transform_1, window_bounds = array<i64: 32, 32>}, {pipeline_mode = #tpu.pipeline_mode<synchronous>, transform_indices = @transform_2, window_bounds = array<i64: 32, 1>}, {pipeline_mode = #tpu.pipeline_mode<synchronous>, transform_indices = @transform_3, window_bounds = array<i64: 2, 1, 16>}, {pipeline_mode = #tpu.pipeline_mode<synchronous>, transform_indices = @transform_4, window_bounds = array<i64: 32, 1>}, {transform_indices = @transform_5, window_bounds = array<i64: 1, 32, 96>}, {transform_indices = @transform_6, window_bounds = array<i64: 1, 1, 96>}, {transform_indices = @transform_7, window_bounds = array<i64: 1, 32, 32>}, {transform_indices = @transform_8, window_bounds = array<i64: 1, 1, 32>}, {transform_indices = @transform_9, window_bounds = array<i64: 1, 1, 32>}, {transform_indices = @transform_10, window_bounds = array<i64: 1, 3, 32, 64>}, {transform_indices = @transform_11, window_bounds = array<i64: 1, 1, 64>}, {transform_indices = @transform_12, window_bounds = array<i64: 1, 3, 64, 32>}, {transform_indices = @transform_13, window_bounds = array<i64: 1, 1, 32>}, {transform_indices = @transform_14, window_bounds = array<i64: 1, 1, 32>}, {transform_indices = @transform_15, window_bounds = array<i64: 1, 1, 32>}, {pipeline_mode = #tpu.pipeline_mode<synchronous>, transform_indices = @transform_16, window_bounds = array<i64: 32, 1>}, {pipeline_mode = #tpu.pipeline_mode<synchronous>, transform_indices = @transform_17, window_bounds = array<i64: 1, 1>}, {pipeline_mode = #tpu.pipeline_mode<synchronous>, transform_indices = @transform_18, window_bounds = array<i64: 32, 1>}]} {
    %c0 = arith.constant 0 : index
    %c0_0 = arith.constant 0 : index
    %0 = vector.load %arg3[%c0, %c0_0] : memref<32x1xf32, #tpu.memory_space<vmem>>, vector<32x1xf32>
    %c0_1 = arith.constant 0 : index
    %c0_2 = arith.constant 0 : index
    %c0_3 = arith.constant 0 : index
    %1 = vector.load %arg4[%c0_1, %c0_2, %c0_3] : memref<2x1x16xf32, #tpu.memory_space<vmem>>, vector<2x1x16xf32>
    %c0_i32 = arith.constant 0 : i32
    %2 = arith.cmpi eq, %arg0, %c0_i32 : i32
    %3 = arith.extui %2 : i1 to i32
    %c0_i32_4 = arith.constant 0 : i32
    %4 = arith.cmpi ne, %3, %c0_i32_4 : i32
    scf.if %4 {
      %c0_116 = arith.constant 0 : index
      %c0_117 = arith.constant 0 : index
      %222 = vector.load %arg1[%c0_116, %c0_117] : memref<32x32xf32, #tpu.memory_space<vmem>>, vector<32x32xf32>
      %c0_118 = arith.constant 0 : index
      %c0_119 = arith.constant 0 : index
      %223 = vector.load %arg2[%c0_118, %c0_119] : memref<32x32xf32, #tpu.memory_space<vmem>>, vector<32x32xf32>
      %224 = vector.broadcast %0 : vector<32x1xf32> to vector<32x32xf32>
      %225 = arith.mulf %223, %224 : vector<32x32xf32>
      %226 = arith.addf %222, %225 : vector<32x32xf32>
      %c0_120 = arith.constant 0 : index
      %c0_121 = arith.constant 0 : index
      %227 = vector.load %arg20[%c0_120, %c0_121] : memref<32x32xf32, #tpu.memory_space<vmem>>, vector<32x32xf32>
      tpu.vector_store %arg20[%c0_120, %c0_121], %226 {strides = array<i32>} : memref<32x32xf32, #tpu.memory_space<vmem>>, vector<32x32xf32>,
    } else {
    }
    %c0_5 = arith.constant 0 : index
    %c0_6 = arith.constant 0 : index
    %5 = vector.load %arg20[%c0_5, %c0_6] : memref<32x32xf32, #tpu.memory_space<vmem>>, vector<32x32xf32>
    %c0_7 = arith.constant 0 : index
    %c0_8 = arith.constant 0 : index
    %c0_9 = arith.constant 0 : index
    %6 = vector.load %arg6[%c0_7, %c0_8, %c0_9] : memref<1x32x96xf32, #tpu.memory_space<vmem>>, vector<1x32x96xf32>
    %7 = vector.shape_cast %6 : vector<1x32x96xf32> to vector<32x96xf32>
    %cst = arith.constant dense<0.000000e+00> : vector<32x96xf32>
    %8 = tpu.matmul %5, %7, %cst {dimension_numbers = #tpu.dot_dimension_numbers<[1], [0], [0], [1], [0, 0, 1, 1], [], []>} : vector<32x32xf32>, vector<32x96xf32>, vector<32x96xf32> -> vector<32x96xf32>
    %c0_10 = arith.constant 0 : index
    %c0_11 = arith.constant 0 : index
    %c0_12 = arith.constant 0 : index
    %9 = vector.load %arg7[%c0_10, %c0_11, %c0_12] : memref<1x1x96xf32, #tpu.memory_space<vmem>>, vector<1x1x96xf32>
    %10 = vector.shape_cast %9 : vector<1x1x96xf32> to vector<1x96xf32>
    %11 = vector.broadcast %10 : vector<1x96xf32> to vector<32x96xf32>
    %12 = arith.addf %8, %11 : vector<32x96xf32>
    %13 = vector.extract_strided_slice %12 {offsets = [0, 0], sizes = [32, 16], strides = [1, 1]} : vector<32x96xf32> to vector<32x16xf32>
    %14 = vector.shape_cast %13 : vector<32x16xf32> to vector<2x16x16xf32>
    %15 = vector.extract_strided_slice %12 {offsets = [0, 32], sizes = [32, 16], strides = [1, 1]} : vector<32x96xf32> to vector<32x16xf32>
    %16 = vector.shape_cast %15 : vector<32x16xf32> to vector<2x16x16xf32>
    %17 = vector.extract_strided_slice %12 {offsets = [0, 64], sizes = [32, 16], strides = [1, 1]} : vector<32x96xf32> to vector<32x16xf32>
    %18 = vector.shape_cast %17 : vector<32x16xf32> to vector<2x16x16xf32>
    "tpu.trace_start"() <{level = 10 : i32, message = "bqd,bkd->bqk"}> : () -> ()
    %cst_13 = arith.constant dense<0.000000e+00> : vector<2x16x16xf32>
    %19 = tpu.matmul %14, %16, %cst_13 {dimension_numbers = #tpu.dot_dimension_numbers<[2], [2], [1], [1], [0, 0, 0, 1, 1, 1], [0], [0]>} : vector<2x16x16xf32>, vector<2x16x16xf32>, vector<2x16x16xf32> -> vector<2x16x16xf32>
    "tpu.trace_stop"() : () -> ()
    %cst_14 = arith.constant 2.500000e-01 : f32
    %20 = vector.broadcast %cst_14 : f32 to vector<2x16x16xf32>
    %21 = arith.mulf %19, %20 : vector<2x16x16xf32>
    %cst_15 = arith.constant 5.000000e-01 : f32
    %22 = vector.broadcast %cst_15 : f32 to vector<2x1x16xf32>
    %23 = arith.cmpf ogt, %1, %22 : vector<2x1x16xf32>
    %cst_16 = arith.constant -1.000000e+30 : f32
    %24 = vector.shape_cast %23 : vector<2x1x16xi1> to vector<2x1x16xi1>
    %25 = vector.broadcast %24 : vector<2x1x16xi1> to vector<2x16x16xi1>
    %26 = vector.broadcast %cst_16 : f32 to vector<2x16x16xf32>
    %27 = arith.select %25, %21, %26 : vector<2x16x16xi1>, vector<2x16x16xf32>
    %cst_17 = arith.constant dense<0xFF800000> : vector<2x16xf32>
    %28 = vector.multi_reduction <maximumf>, %27, %cst_17 [2] : vector<2x16x16xf32> to vector<2x16xf32>
    %29 = vector.shape_cast %28 : vector<2x16xf32> to vector<2x16x1xf32>
    %30 = vector.broadcast %29 : vector<2x16x1xf32> to vector<2x16x16xf32>
    %31 = arith.subf %27, %30 : vector<2x16x16xf32>
    %32 = math.exp %31 : vector<2x16x16xf32>
    %cst_18 = arith.constant dense<0.000000e+00> : vector<2x16xf32>
    %33 = vector.multi_reduction <add>, %32, %cst_18 [2] : vector<2x16x16xf32> to vector<2x16xf32>
    %34 = vector.shape_cast %33 : vector<2x16xf32> to vector<2x16x1xf32>
    %35 = tpu.reciprocal %34 {approx = true} : vector<2x16x1xf32> -> vector<2x16x1xf32>
    %36 = vector.broadcast %35 : vector<2x16x1xf32> to vector<2x16x16xf32>
    %37 = arith.mulf %32, %36 : vector<2x16x16xf32>
    "tpu.trace_start"() <{level = 10 : i32, message = "bqk,bkd->bqd"}> : () -> ()
    %cst_19 = arith.constant dense<0.000000e+00> : vector<2x16x16xf32>
    %38 = tpu.matmul %37, %18, %cst_19 {dimension_numbers = #tpu.dot_dimension_numbers<[2], [1], [1], [2], [0, 0, 0, 1, 1, 2], [0], [0]>} : vector<2x16x16xf32>, vector<2x16x16xf32>, vector<2x16x16xf32> -> vector<2x16x16xf32>
    "tpu.trace_stop"() : () -> ()
    %39 = vector.shape_cast %38 : vector<2x16x16xf32> to vector<32x16xf32>
    %40 = vector.extract_strided_slice %12 {offsets = [0, 16], sizes = [32, 16], strides = [1, 1]} : vector<32x96xf32> to vector<32x16xf32>
    %41 = vector.shape_cast %40 : vector<32x16xf32> to vector<2x16x16xf32>
    %42 = vector.extract_strided_slice %12 {offsets = [0, 48], sizes = [32, 16], strides = [1, 1]} : vector<32x96xf32> to vector<32x16xf32>
    %43 = vector.shape_cast %42 : vector<32x16xf32> to vector<2x16x16xf32>
    %44 = vector.extract_strided_slice %12 {offsets = [0, 80], sizes = [32, 16], strides = [1, 1]} : vector<32x96xf32> to vector<32x16xf32>
    %45 = vector.shape_cast %44 : vector<32x16xf32> to vector<2x16x16xf32>
    "tpu.trace_start"() <{level = 10 : i32, message = "bqd,bkd->bqk"}> : () -> ()
    %cst_20 = arith.constant dense<0.000000e+00> : vector<2x16x16xf32>
    %46 = tpu.matmul %41, %43, %cst_20 {dimension_numbers = #tpu.dot_dimension_numbers<[2], [2], [1], [1], [0, 0, 0, 1, 1, 1], [0], [0]>} : vector<2x16x16xf32>, vector<2x16x16xf32>, vector<2x16x16xf32> -> vector<2x16x16xf32>
    "tpu.trace_stop"() : () -> ()
    %cst_21 = arith.constant 2.500000e-01 : f32
    %47 = vector.broadcast %cst_21 : f32 to vector<2x16x16xf32>
    %48 = arith.mulf %46, %47 : vector<2x16x16xf32>
    %cst_22 = arith.constant 5.000000e-01 : f32
    %49 = vector.broadcast %cst_22 : f32 to vector<2x1x16xf32>
    %50 = arith.cmpf ogt, %1, %49 : vector<2x1x16xf32>
    %cst_23 = arith.constant -1.000000e+30 : f32
    %51 = vector.shape_cast %50 : vector<2x1x16xi1> to vector<2x1x16xi1>
    %52 = vector.broadcast %51 : vector<2x1x16xi1> to vector<2x16x16xi1>
    %53 = vector.broadcast %cst_23 : f32 to vector<2x16x16xf32>
    %54 = arith.select %52, %48, %53 : vector<2x16x16xi1>, vector<2x16x16xf32>
    %cst_24 = arith.constant dense<0xFF800000> : vector<2x16xf32>
    %55 = vector.multi_reduction <maximumf>, %54, %cst_24 [2] : vector<2x16x16xf32> to vector<2x16xf32>
    %56 = vector.shape_cast %55 : vector<2x16xf32> to vector<2x16x1xf32>
    %57 = vector.broadcast %56 : vector<2x16x1xf32> to vector<2x16x16xf32>
    %58 = arith.subf %54, %57 : vector<2x16x16xf32>
    %59 = math.exp %58 : vector<2x16x16xf32>
    %cst_25 = arith.constant dense<0.000000e+00> : vector<2x16xf32>
    %60 = vector.multi_reduction <add>, %59, %cst_25 [2] : vector<2x16x16xf32> to vector<2x16xf32>
    %61 = vector.shape_cast %60 : vector<2x16xf32> to vector<2x16x1xf32>
    %62 = tpu.reciprocal %61 {approx = true} : vector<2x16x1xf32> -> vector<2x16x1xf32>
    %63 = vector.broadcast %62 : vector<2x16x1xf32> to vector<2x16x16xf32>
    %64 = arith.mulf %59, %63 : vector<2x16x16xf32>
    "tpu.trace_start"() <{level = 10 : i32, message = "bqk,bkd->bqd"}> : () -> ()
    %cst_26 = arith.constant dense<0.000000e+00> : vector<2x16x16xf32>
    %65 = tpu.matmul %64, %45, %cst_26 {dimension_numbers = #tpu.dot_dimension_numbers<[2], [1], [1], [2], [0, 0, 0, 1, 1, 2], [0], [0]>} : vector<2x16x16xf32>, vector<2x16x16xf32>, vector<2x16x16xf32> -> vector<2x16x16xf32>
    "tpu.trace_stop"() : () -> ()
    %66 = vector.shape_cast %65 : vector<2x16x16xf32> to vector<32x16xf32>
    %67 = tpu.concatenate %39, %66 in 1 : vector<32x16xf32>, vector<32x16xf32> -> vector<32x32xf32>
    %c0_27 = arith.constant 0 : index
    %c0_28 = arith.constant 0 : index
    %c0_29 = arith.constant 0 : index
    %68 = vector.load %arg8[%c0_27, %c0_28, %c0_29] : memref<1x32x32xf32, #tpu.memory_space<vmem>>, vector<1x32x32xf32>
    %69 = vector.shape_cast %68 : vector<1x32x32xf32> to vector<32x32xf32>
    %cst_30 = arith.constant dense<0.000000e+00> : vector<32x32xf32>
    %70 = tpu.matmul %67, %69, %cst_30 {dimension_numbers = #tpu.dot_dimension_numbers<[1], [0], [0], [1], [0, 0, 1, 1], [], []>} : vector<32x32xf32>, vector<32x32xf32>, vector<32x32xf32> -> vector<32x32xf32>
    %71 = arith.addf %5, %70 : vector<32x32xf32>
    %c0_31 = arith.constant 0 : index
    %c0_32 = arith.constant 0 : index
    %c0_33 = arith.constant 0 : index
    %72 = vector.load %arg9[%c0_31, %c0_32, %c0_33] : memref<1x1x32xf32, #tpu.memory_space<vmem>>, vector<1x1x32xf32>
    %73 = vector.shape_cast %72 : vector<1x1x32xf32> to vector<1x32xf32>
    %c0_34 = arith.constant 0 : index
    %c0_35 = arith.constant 0 : index
    %c0_36 = arith.constant 0 : index
    %74 = vector.load %arg10[%c0_34, %c0_35, %c0_36] : memref<1x1x32xf32, #tpu.memory_space<vmem>>, vector<1x1x32xf32>
    %75 = vector.shape_cast %74 : vector<1x1x32xf32> to vector<1x32xf32>
    %cst_37 = arith.constant dense<0.000000e+00> : vector<32xf32>
    %76 = vector.multi_reduction <add>, %71, %cst_37 [1] : vector<32x32xf32> to vector<32xf32>
    %77 = vector.shape_cast %76 : vector<32xf32> to vector<32x1xf32>
    %cst_38 = arith.constant 3.200000e+01 : f32
    %78 = vector.broadcast %cst_38 : f32 to vector<32x1xf32>
    %79 = arith.divf %77, %78 : vector<32x1xf32>
    %80 = vector.broadcast %79 : vector<32x1xf32> to vector<32x32xf32>
    %81 = arith.subf %71, %80 : vector<32x32xf32>
    %82 = arith.mulf %81, %81 : vector<32x32xf32>
    %cst_39 = arith.constant dense<0.000000e+00> : vector<32xf32>
    %83 = vector.multi_reduction <add>, %82, %cst_39 [1] : vector<32x32xf32> to vector<32xf32>
    %84 = vector.shape_cast %83 : vector<32xf32> to vector<32x1xf32>
    %cst_40 = arith.constant 3.200000e+01 : f32
    %85 = vector.broadcast %cst_40 : f32 to vector<32x1xf32>
    %86 = arith.divf %84, %85 : vector<32x1xf32>
    %87 = vector.broadcast %79 : vector<32x1xf32> to vector<32x32xf32>
    %88 = arith.subf %71, %87 : vector<32x32xf32>
    %cst_41 = arith.constant 9.99999974E-6 : f32
    %89 = vector.broadcast %cst_41 : f32 to vector<32x1xf32>
    %90 = arith.addf %86, %89 : vector<32x1xf32>
    %91 = math.rsqrt %90 : vector<32x1xf32>
    %92 = vector.broadcast %91 : vector<32x1xf32> to vector<32x32xf32>
    %93 = arith.mulf %88, %92 : vector<32x32xf32>
    %94 = vector.broadcast %73 : vector<1x32xf32> to vector<32x32xf32>
    %95 = arith.mulf %93, %94 : vector<32x32xf32>
    %96 = vector.broadcast %75 : vector<1x32xf32> to vector<32x32xf32>
    %97 = arith.addf %95, %96 : vector<32x32xf32>
    %98 = vector.broadcast %0 : vector<32x1xf32> to vector<32x32xf32>
    %99 = arith.mulf %97, %98 : vector<32x32xf32>
    %c0_42 = arith.constant 0 : index
    %c0_43 = arith.constant 0 : index
    %100 = vector.load %arg5[%c0_42, %c0_43] : memref<32x1xf32, #tpu.memory_space<vmem>>, vector<32x1xf32>
    %c0_44 = arith.constant 0 : index
    %c1 = arith.constant 1 : index
    %c0_45 = arith.constant 0 : index
    %c0_46 = arith.constant 0 : index
    %101 = vector.load %arg11[%c0_44, %c1, %c0_45, %c0_46] : memref<1x3x32x64xf32, #tpu.memory_space<vmem>>, vector<1x1x32x64xf32>
    %102 = vector.shape_cast %101 : vector<1x1x32x64xf32> to vector<32x64xf32>
    %cst_47 = arith.constant dense<0.000000e+00> : vector<32x64xf32>
    %103 = tpu.matmul %99, %102, %cst_47 {dimension_numbers = #tpu.dot_dimension_numbers<[1], [0], [0], [1], [0, 0, 1, 1], [], []>} : vector<32x32xf32>, vector<32x64xf32>, vector<32x64xf32> -> vector<32x64xf32>
    %c1_i32 = arith.constant 1 : i32
    %104 = tpu.dynamic_rotate %99 by %c1_i32 dim 0 : vector<32x32xf32>, i32 -> vector<32x32xf32>
    %cst_48 = arith.constant -1.000000e+00 : f32
    %105 = vector.broadcast %cst_48 : f32 to vector<32x1xf32>
    %106 = arith.addf %100, %105 : vector<32x1xf32>
    %cst_49 = arith.constant 0.000000e+00 : f32
    %107 = vector.broadcast %cst_49 : f32 to vector<32x1xf32>
    %108 = arith.cmpf oge, %106, %107 : vector<32x1xf32>
    %cst_50 = arith.constant -1.000000e+00 : f32
    %109 = vector.broadcast %cst_50 : f32 to vector<32x1xf32>
    %110 = arith.addf %100, %109 : vector<32x1xf32>
    %cst_51 = arith.constant 1.600000e+01 : f32
    %111 = vector.broadcast %cst_51 : f32 to vector<32x1xf32>
    %112 = arith.cmpf olt, %110, %111 : vector<32x1xf32>
    %113 = arith.andi %108, %112 : vector<32x1xi1>
    %cst_52 = arith.constant 0.000000e+00 : f32
    %114 = vector.shape_cast %113 : vector<32x1xi1> to vector<32x1xi1>
    %115 = vector.broadcast %114 : vector<32x1xi1> to vector<32x32xi1>
    %116 = vector.broadcast %cst_52 : f32 to vector<32x32xf32>
    %117 = arith.select %115, %104, %116 : vector<32x32xi1>, vector<32x32xf32>
    %c0_53 = arith.constant 0 : index
    %c0_54 = arith.constant 0 : index
    %c0_55 = arith.constant 0 : index
    %c0_56 = arith.constant 0 : index
    %118 = vector.load %arg11[%c0_53, %c0_54, %c0_55, %c0_56] : memref<1x3x32x64xf32, #tpu.memory_space<vmem>>, vector<1x1x32x64xf32>
    %119 = vector.shape_cast %118 : vector<1x1x32x64xf32> to vector<32x64xf32>
    %cst_57 = arith.constant dense<0.000000e+00> : vector<32x64xf32>
    %120 = tpu.matmul %117, %119, %cst_57 {dimension_numbers = #tpu.dot_dimension_numbers<[1], [0], [0], [1], [0, 0, 1, 1], [], []>} : vector<32x32xf32>, vector<32x64xf32>, vector<32x64xf32> -> vector<32x64xf32>
    %121 = arith.addf %103, %120 : vector<32x64xf32>
    %c31_i32 = arith.constant 31 : i32
    %122 = tpu.dynamic_rotate %99 by %c31_i32 dim 0 : vector<32x32xf32>, i32 -> vector<32x32xf32>
    %cst_58 = arith.constant 1.000000e+00 : f32
    %123 = vector.broadcast %cst_58 : f32 to vector<32x1xf32>
    %124 = arith.addf %100, %123 : vector<32x1xf32>
    %cst_59 = arith.constant 0.000000e+00 : f32
    %125 = vector.broadcast %cst_59 : f32 to vector<32x1xf32>
    %126 = arith.cmpf oge, %124, %125 : vector<32x1xf32>
    %cst_60 = arith.constant 1.000000e+00 : f32
    %127 = vector.broadcast %cst_60 : f32 to vector<32x1xf32>
    %128 = arith.addf %100, %127 : vector<32x1xf32>
    %cst_61 = arith.constant 1.600000e+01 : f32
    %129 = vector.broadcast %cst_61 : f32 to vector<32x1xf32>
    %130 = arith.cmpf olt, %128, %129 : vector<32x1xf32>
    %131 = arith.andi %126, %130 : vector<32x1xi1>
    %cst_62 = arith.constant 0.000000e+00 : f32
    %132 = vector.shape_cast %131 : vector<32x1xi1> to vector<32x1xi1>
    %133 = vector.broadcast %132 : vector<32x1xi1> to vector<32x32xi1>
    %134 = vector.broadcast %cst_62 : f32 to vector<32x32xf32>
    %135 = arith.select %133, %122, %134 : vector<32x32xi1>, vector<32x32xf32>
    %c0_63 = arith.constant 0 : index
    %c2 = arith.constant 2 : index
    %c0_64 = arith.constant 0 : index
    %c0_65 = arith.constant 0 : index
    %136 = vector.load %arg11[%c0_63, %c2, %c0_64, %c0_65] : memref<1x3x32x64xf32, #tpu.memory_space<vmem>>, vector<1x1x32x64xf32>
    %137 = vector.shape_cast %136 : vector<1x1x32x64xf32> to vector<32x64xf32>
    %cst_66 = arith.constant dense<0.000000e+00> : vector<32x64xf32>
    %138 = tpu.matmul %135, %137, %cst_66 {dimension_numbers = #tpu.dot_dimension_numbers<[1], [0], [0], [1], [0, 0, 1, 1], [], []>} : vector<32x32xf32>, vector<32x64xf32>, vector<32x64xf32> -> vector<32x64xf32>
    %139 = arith.addf %121, %138 : vector<32x64xf32>
    %c0_67 = arith.constant 0 : index
    %c0_68 = arith.constant 0 : index
    %c0_69 = arith.constant 0 : index
    %140 = vector.load %arg12[%c0_67, %c0_68, %c0_69] : memref<1x1x64xf32, #tpu.memory_space<vmem>>, vector<1x1x64xf32>
    %141 = vector.shape_cast %140 : vector<1x1x64xf32> to vector<1x64xf32>
    %142 = vector.broadcast %141 : vector<1x64xf32> to vector<32x64xf32>
    %143 = arith.addf %139, %142 : vector<32x64xf32>
    %cst_70 = arith.constant 0.000000e+00 : f32
    %144 = vector.broadcast %cst_70 : f32 to vector<32x64xf32>
    %145 = arith.maximumf %143, %144 : vector<32x64xf32>
    %c0_71 = arith.constant 0 : index
    %c1_72 = arith.constant 1 : index
    %c0_73 = arith.constant 0 : index
    %c0_74 = arith.constant 0 : index
    %146 = vector.load %arg13[%c0_71, %c1_72, %c0_73, %c0_74] : memref<1x3x64x32xf32, #tpu.memory_space<vmem>>, vector<1x1x64x32xf32>
    %147 = vector.shape_cast %146 : vector<1x1x64x32xf32> to vector<64x32xf32>
    %cst_75 = arith.constant dense<0.000000e+00> : vector<32x32xf32>
    %148 = tpu.matmul %145, %147, %cst_75 {dimension_numbers = #tpu.dot_dimension_numbers<[1], [0], [0], [1], [0, 0, 1, 1], [], []>} : vector<32x64xf32>, vector<64x32xf32>, vector<32x32xf32> -> vector<32x32xf32>
    %c1_i32_76 = arith.constant 1 : i32
    %149 = tpu.dynamic_rotate %145 by %c1_i32_76 dim 0 : vector<32x64xf32>, i32 -> vector<32x64xf32>
    %cst_77 = arith.constant -1.000000e+00 : f32
    %150 = vector.broadcast %cst_77 : f32 to vector<32x1xf32>
    %151 = arith.addf %100, %150 : vector<32x1xf32>
    %cst_78 = arith.constant 0.000000e+00 : f32
    %152 = vector.broadcast %cst_78 : f32 to vector<32x1xf32>
    %153 = arith.cmpf oge, %151, %152 : vector<32x1xf32>
    %cst_79 = arith.constant -1.000000e+00 : f32
    %154 = vector.broadcast %cst_79 : f32 to vector<32x1xf32>
    %155 = arith.addf %100, %154 : vector<32x1xf32>
    %cst_80 = arith.constant 1.600000e+01 : f32
    %156 = vector.broadcast %cst_80 : f32 to vector<32x1xf32>
    %157 = arith.cmpf olt, %155, %156 : vector<32x1xf32>
    %158 = arith.andi %153, %157 : vector<32x1xi1>
    %cst_81 = arith.constant 0.000000e+00 : f32
    %159 = vector.shape_cast %158 : vector<32x1xi1> to vector<32x1xi1>
    %160 = vector.broadcast %159 : vector<32x1xi1> to vector<32x64xi1>
    %161 = vector.broadcast %cst_81 : f32 to vector<32x64xf32>
    %162 = arith.select %160, %149, %161 : vector<32x64xi1>, vector<32x64xf32>
    %c0_82 = arith.constant 0 : index
    %c0_83 = arith.constant 0 : index
    %c0_84 = arith.constant 0 : index
    %c0_85 = arith.constant 0 : index
    %163 = vector.load %arg13[%c0_82, %c0_83, %c0_84, %c0_85] : memref<1x3x64x32xf32, #tpu.memory_space<vmem>>, vector<1x1x64x32xf32>
    %164 = vector.shape_cast %163 : vector<1x1x64x32xf32> to vector<64x32xf32>
    %cst_86 = arith.constant dense<0.000000e+00> : vector<32x32xf32>
    %165 = tpu.matmul %162, %164, %cst_86 {dimension_numbers = #tpu.dot_dimension_numbers<[1], [0], [0], [1], [0, 0, 1, 1], [], []>} : vector<32x64xf32>, vector<64x32xf32>, vector<32x32xf32> -> vector<32x32xf32>
    %166 = arith.addf %148, %165 : vector<32x32xf32>
    %c31_i32_87 = arith.constant 31 : i32
    %167 = tpu.dynamic_rotate %145 by %c31_i32_87 dim 0 : vector<32x64xf32>, i32 -> vector<32x64xf32>
    %cst_88 = arith.constant 1.000000e+00 : f32
    %168 = vector.broadcast %cst_88 : f32 to vector<32x1xf32>
    %169 = arith.addf %100, %168 : vector<32x1xf32>
    %cst_89 = arith.constant 0.000000e+00 : f32
    %170 = vector.broadcast %cst_89 : f32 to vector<32x1xf32>
    %171 = arith.cmpf oge, %169, %170 : vector<32x1xf32>
    %cst_90 = arith.constant 1.000000e+00 : f32
    %172 = vector.broadcast %cst_90 : f32 to vector<32x1xf32>
    %173 = arith.addf %100, %172 : vector<32x1xf32>
    %cst_91 = arith.constant 1.600000e+01 : f32
    %174 = vector.broadcast %cst_91 : f32 to vector<32x1xf32>
    %175 = arith.cmpf olt, %173, %174 : vector<32x1xf32>
    %176 = arith.andi %171, %175 : vector<32x1xi1>
    %cst_92 = arith.constant 0.000000e+00 : f32
    %177 = vector.shape_cast %176 : vector<32x1xi1> to vector<32x1xi1>
    %178 = vector.broadcast %177 : vector<32x1xi1> to vector<32x64xi1>
    %179 = vector.broadcast %cst_92 : f32 to vector<32x64xf32>
    %180 = arith.select %178, %167, %179 : vector<32x64xi1>, vector<32x64xf32>
    %c0_93 = arith.constant 0 : index
    %c2_94 = arith.constant 2 : index
    %c0_95 = arith.constant 0 : index
    %c0_96 = arith.constant 0 : index
    %181 = vector.load %arg13[%c0_93, %c2_94, %c0_95, %c0_96] : memref<1x3x64x32xf32, #tpu.memory_space<vmem>>, vector<1x1x64x32xf32>
    %182 = vector.shape_cast %181 : vector<1x1x64x32xf32> to vector<64x32xf32>
    %cst_97 = arith.constant dense<0.000000e+00> : vector<32x32xf32>
    %183 = tpu.matmul %180, %182, %cst_97 {dimension_numbers = #tpu.dot_dimension_numbers<[1], [0], [0], [1], [0, 0, 1, 1], [], []>} : vector<32x64xf32>, vector<64x32xf32>, vector<32x32xf32> -> vector<32x32xf32>
    %184 = arith.addf %166, %183 : vector<32x32xf32>
    %c0_98 = arith.constant 0 : index
    %c0_99 = arith.constant 0 : index
    %c0_100 = arith.constant 0 : index
    %185 = vector.load %arg14[%c0_98, %c0_99, %c0_100] : memref<1x1x32xf32, #tpu.memory_space<vmem>>, vector<1x1x32xf32>
    %186 = vector.shape_cast %185 : vector<1x1x32xf32> to vector<1x32xf32>
    %187 = vector.broadcast %186 : vector<1x32xf32> to vector<32x32xf32>
    %188 = arith.addf %184, %187 : vector<32x32xf32>
    %189 = arith.addf %99, %188 : vector<32x32xf32>
    %c0_101 = arith.constant 0 : index
    %c0_102 = arith.constant 0 : index
    %c0_103 = arith.constant 0 : index
    %190 = vector.load %arg15[%c0_101, %c0_102, %c0_103] : memref<1x1x32xf32, #tpu.memory_space<vmem>>, vector<1x1x32xf32>
    %191 = vector.shape_cast %190 : vector<1x1x32xf32> to vector<1x32xf32>
    %c0_104 = arith.constant 0 : index
    %c0_105 = arith.constant 0 : index
    %c0_106 = arith.constant 0 : index
    %192 = vector.load %arg16[%c0_104, %c0_105, %c0_106] : memref<1x1x32xf32, #tpu.memory_space<vmem>>, vector<1x1x32xf32>
    %193 = vector.shape_cast %192 : vector<1x1x32xf32> to vector<1x32xf32>
    %cst_107 = arith.constant dense<0.000000e+00> : vector<32xf32>
    %194 = vector.multi_reduction <add>, %189, %cst_107 [1] : vector<32x32xf32> to vector<32xf32>
    %195 = vector.shape_cast %194 : vector<32xf32> to vector<32x1xf32>
    %cst_108 = arith.constant 3.200000e+01 : f32
    %196 = vector.broadcast %cst_108 : f32 to vector<32x1xf32>
    %197 = arith.divf %195, %196 : vector<32x1xf32>
    %198 = vector.broadcast %197 : vector<32x1xf32> to vector<32x32xf32>
    %199 = arith.subf %189, %198 : vector<32x32xf32>
    %200 = arith.mulf %199, %199 : vector<32x32xf32>
    %cst_109 = arith.constant dense<0.000000e+00> : vector<32xf32>
    %201 = vector.multi_reduction <add>, %200, %cst_109 [1] : vector<32x32xf32> to vector<32xf32>
    %202 = vector.shape_cast %201 : vector<32xf32> to vector<32x1xf32>
    %cst_110 = arith.constant 3.200000e+01 : f32
    %203 = vector.broadcast %cst_110 : f32 to vector<32x1xf32>
    %204 = arith.divf %202, %203 : vector<32x1xf32>
    %205 = vector.broadcast %197 : vector<32x1xf32> to vector<32x32xf32>
    %206 = arith.subf %189, %205 : vector<32x32xf32>
    %cst_111 = arith.constant 9.99999974E-6 : f32
    %207 = vector.broadcast %cst_111 : f32 to vector<32x1xf32>
    %208 = arith.addf %204, %207 : vector<32x1xf32>
    %209 = math.rsqrt %208 : vector<32x1xf32>
    %210 = vector.broadcast %209 : vector<32x1xf32> to vector<32x32xf32>
    %211 = arith.mulf %206, %210 : vector<32x32xf32>
    %212 = vector.broadcast %191 : vector<1x32xf32> to vector<32x32xf32>
    %213 = arith.mulf %211, %212 : vector<32x32xf32>
    %214 = vector.broadcast %193 : vector<1x32xf32> to vector<32x32xf32>
    %215 = arith.addf %213, %214 : vector<32x32xf32>
    %216 = vector.broadcast %0 : vector<32x1xf32> to vector<32x32xf32>
    %217 = arith.mulf %215, %216 : vector<32x32xf32>
    %c0_112 = arith.constant 0 : index
    %c0_113 = arith.constant 0 : index
    %218 = vector.load %arg20[%c0_112, %c0_113] : memref<32x32xf32, #tpu.memory_space<vmem>>, vector<32x32xf32>
    tpu.vector_store %arg20[%c0_112, %c0_113], %217 {strides = array<i32>} : memref<32x32xf32, #tpu.memory_space<vmem>>, vector<32x32xf32>,
    %c1_i32_114 = arith.constant 1 : i32
    %219 = arith.cmpi eq, %arg0, %c1_i32_114 : i32
    %220 = arith.extui %219 : i1 to i32
    %c0_i32_115 = arith.constant 0 : i32
    %221 = arith.cmpi ne, %220, %c0_i32_115 : i32
    scf.if %221 {
      %c0_116 = arith.constant 0 : index
      %c0_117 = arith.constant 0 : index
      %222 = vector.load %arg17[%c0_116, %c0_117] : memref<32x1xf32, #tpu.memory_space<vmem>>, vector<32x1xf32>
      %cst_118 = arith.constant dense<0.000000e+00> : vector<32x1xf32>
      %223 = tpu.matmul %217, %222, %cst_118 {dimension_numbers = #tpu.dot_dimension_numbers<[1], [0], [0], [1], [0, 0, 1, 1], [], []>} : vector<32x32xf32>, vector<32x1xf32>, vector<32x1xf32> -> vector<32x1xf32>
      %c0_119 = arith.constant 0 : index
      %c0_120 = arith.constant 0 : index
      %224 = vector.load %arg18[%c0_119, %c0_120] : memref<1x1xf32, #tpu.memory_space<vmem>>, vector<1x1xf32>
      %225 = vector.broadcast %224 : vector<1x1xf32> to vector<32x1xf32>
      %226 = arith.addf %223, %225 : vector<32x1xf32>
      %c0_121 = arith.constant 0 : index
      %c0_122 = arith.constant 0 : index
      %227 = vector.load %arg19[%c0_121, %c0_122] : memref<32x1xf32, #tpu.memory_space<vmem>>, vector<32x1xf32>
      tpu.vector_store %arg19[%c0_121, %c0_122], %226 {strides = array<i32>} : memref<32x1xf32, #tpu.memory_space<vmem>>, vector<32x1xf32>,
    } else {
    }
    return
  }
  func.func @transform_0(%arg0: i32) -> (i32, i32) {
    %c0_i32 = arith.constant 0 : i32
    %c0_i32_0 = arith.constant 0 : i32
    %c0_i32_1 = arith.constant 0 : i32
    return %c0_i32, %c0_i32_0 : i32, i32
  }
  func.func @transform_1(%arg0: i32) -> (i32, i32) {
    %c0_i32 = arith.constant 0 : i32
    %c0_i32_0 = arith.constant 0 : i32
    %c0_i32_1 = arith.constant 0 : i32
    return %c0_i32, %c0_i32_0 : i32, i32
  }
  func.func @transform_2(%arg0: i32) -> (i32, i32) {
    %c0_i32 = arith.constant 0 : i32
    %c0_i32_0 = arith.constant 0 : i32
    %c0_i32_1 = arith.constant 0 : i32
    return %c0_i32, %c0_i32_0 : i32, i32
  }
  func.func @transform_3(%arg0: i32) -> (i32, i32, i32) {
    %c0_i32 = arith.constant 0 : i32
    %c0_i32_0 = arith.constant 0 : i32
    %c0_i32_1 = arith.constant 0 : i32
    %c0_i32_2 = arith.constant 0 : i32
    return %c0_i32, %c0_i32_0, %c0_i32_1 : i32, i32, i32
  }
  func.func @transform_4(%arg0: i32) -> (i32, i32) {
    %c0_i32 = arith.constant 0 : i32
    %c0_i32_0 = arith.constant 0 : i32
    %c0_i32_1 = arith.constant 0 : i32
    return %c0_i32, %c0_i32_0 : i32, i32
  }
  func.func @transform_5(%arg0: i32) -> (i32, i32, i32) {
    %c0_i32 = arith.constant 0 : i32
    %c0_i32_0 = arith.constant 0 : i32
    %c0_i32_1 = arith.constant 0 : i32
    return %arg0, %c0_i32, %c0_i32_0 : i32, i32, i32
  }
  func.func @transform_6(%arg0: i32) -> (i32, i32, i32) {
    %c0_i32 = arith.constant 0 : i32
    %c0_i32_0 = arith.constant 0 : i32
    %c0_i32_1 = arith.constant 0 : i32
    return %arg0, %c0_i32, %c0_i32_0 : i32, i32, i32
  }
  func.func @transform_7(%arg0: i32) -> (i32, i32, i32) {
    %c0_i32 = arith.constant 0 : i32
    %c0_i32_0 = arith.constant 0 : i32
    %c0_i32_1 = arith.constant 0 : i32
    return %arg0, %c0_i32, %c0_i32_0 : i32, i32, i32
  }
  func.func @transform_8(%arg0: i32) -> (i32, i32, i32) {
    %c0_i32 = arith.constant 0 : i32
    %c0_i32_0 = arith.constant 0 : i32
    %c0_i32_1 = arith.constant 0 : i32
    return %arg0, %c0_i32, %c0_i32_0 : i32, i32, i32
  }
  func.func @transform_9(%arg0: i32) -> (i32, i32, i32) {
    %c0_i32 = arith.constant 0 : i32
    %c0_i32_0 = arith.constant 0 : i32
    %c0_i32_1 = arith.constant 0 : i32
    return %arg0, %c0_i32, %c0_i32_0 : i32, i32, i32
  }
  func.func @transform_10(%arg0: i32) -> (i32, i32, i32, i32) {
    %c0_i32 = arith.constant 0 : i32
    %c0_i32_0 = arith.constant 0 : i32
    %c0_i32_1 = arith.constant 0 : i32
    %c0_i32_2 = arith.constant 0 : i32
    return %arg0, %c0_i32, %c0_i32_0, %c0_i32_1 : i32, i32, i32, i32
  }
  func.func @transform_11(%arg0: i32) -> (i32, i32, i32) {
    %c0_i32 = arith.constant 0 : i32
    %c0_i32_0 = arith.constant 0 : i32
    %c0_i32_1 = arith.constant 0 : i32
    return %arg0, %c0_i32, %c0_i32_0 : i32, i32, i32
  }
  func.func @transform_12(%arg0: i32) -> (i32, i32, i32, i32) {
    %c0_i32 = arith.constant 0 : i32
    %c0_i32_0 = arith.constant 0 : i32
    %c0_i32_1 = arith.constant 0 : i32
    %c0_i32_2 = arith.constant 0 : i32
    return %arg0, %c0_i32, %c0_i32_0, %c0_i32_1 : i32, i32, i32, i32
  }
  func.func @transform_13(%arg0: i32) -> (i32, i32, i32) {
    %c0_i32 = arith.constant 0 : i32
    %c0_i32_0 = arith.constant 0 : i32
    %c0_i32_1 = arith.constant 0 : i32
    return %arg0, %c0_i32, %c0_i32_0 : i32, i32, i32
  }
  func.func @transform_14(%arg0: i32) -> (i32, i32, i32) {
    %c0_i32 = arith.constant 0 : i32
    %c0_i32_0 = arith.constant 0 : i32
    %c0_i32_1 = arith.constant 0 : i32
    return %arg0, %c0_i32, %c0_i32_0 : i32, i32, i32
  }
  func.func @transform_15(%arg0: i32) -> (i32, i32, i32) {
    %c0_i32 = arith.constant 0 : i32
    %c0_i32_0 = arith.constant 0 : i32
    %c0_i32_1 = arith.constant 0 : i32
    return %arg0, %c0_i32, %c0_i32_0 : i32, i32, i32
  }
  func.func @transform_16(%arg0: i32) -> (i32, i32) {
    %c0_i32 = arith.constant 0 : i32
    %c0_i32_0 = arith.constant 0 : i32
    %c0_i32_1 = arith.constant 0 : i32
    return %c0_i32, %c0_i32_0 : i32, i32
  }
  func.func @transform_17(%arg0: i32) -> (i32, i32) {
    %c0_i32 = arith.constant 0 : i32
    %c0_i32_0 = arith.constant 0 : i32
    %c0_i32_1 = arith.constant 0 : i32
    return %c0_i32, %c0_i32_0 : i32, i32
  }
  func.func @transform_18(%arg0: i32) -> (i32, i32) {
    %c0_i32 = arith.constant 0 : i32
    %c0_i32_0 = arith.constant 0 : i32
    %c0_i32_1 = arith.constant 0 : i32
    return %c0_i32, %c0_i32_0 : i32, i32
  }
}

</mosaic_0001>

<llo_original>
// kernel: tile.0
$region0: #{tile.0}
  %s0 = inlined_call_operand.vmem [shape: f32[2,16], index: 0, kind: input, shape index: {}]
  %s1 = inlined_call_operand.vmem [shape: f32[32,1], index: 1, kind: output, shape index: {}]
  $region1: #{tile.0} parent=0
    #allocation0 [shape = 'u8[4096]{0}', space=vmem, size = 0x1000, scoped, tag = 'scoped mem for input reshape']
    %s3 = ssub.s32 4, 1
    %v4 = vld [vmem:[%s0] sm:%s3]
    %5 = vst [vmem:[#allocation0] sm:%s3] %v4
    %v6 = vld [vmem:[#allocation0] sm:$0x3]
    %vm7 = vcmask 7168
    %8 = vst.msk [vmem:[%s1] ss:$16 sm:$0x3] %vm7, %v6
    %v9 = vld [vmem:[#allocation0] sm:$0x3]
    %10 = vrot.lane.b32.xlu0 %v9, 127
    %v11 = vpop.permute.xlu0 %10
    %vm12 = vcmask 7168
    %s13 = scalar_lea.vmem %s1, 1
    %14 = vst.msk [vmem:[%s13] ss:$16 sm:$0x3] %vm12, %v11
    %v15 = vld [vmem:[#allocation0] sm:$0x3]
    %16 = vrot.lane.b32.xlu0 %v15, 126
    %v17 = vpop.permute.xlu0 %16
    %vm18 = vcmask 7168
    %s19 = scalar_lea.vmem %s1, 2
    %20 = vst.msk [vmem:[%s19] ss:$16 sm:$0x3] %vm18, %v17
    %v21 = vld [vmem:[#allocation0] sm:$0x3]
    %22 = vrot.lane.b32.xlu0 %v21, 125
    %v23 = vpop.permute.xlu0 %22
    %vm24 = vcmask 7168
    %s25 = scalar_lea.vmem %s1, 3
    %26 = vst.msk [vmem:[%s25] ss:$16 sm:$0x3] %vm24, %v23
    %v27 = vld [vmem:[#allocation0] sm:$0x3]
    %28 = vrot.lane.b32.xlu0 %v27, 124
    %v29 = vpop.permute.xlu0 %28
    %vm30 = vcmask 7168
    %s31 = scalar_lea.vmem %s1, 4
    %32 = vst.msk [vmem:[%s31] ss:$16 sm:$0x3] %vm30, %v29
    %v33 = vld [vmem:[#allocation0] sm:$0x3]
    %34 = vrot.lane.b32.xlu0 %v33, 123
    %v35 = vpop.permute.xlu0 %34
    %vm36 = vcmask 7168
    %s37 = scalar_lea.vmem %s1, 5
    %38 = vst.msk [vmem:[%s37] ss:$16 sm:$0x3] %vm36, %v35
    %v39 = vld [vmem:[#allocation0] sm:$0x3]
    %40 = vrot.lane.b32.xlu0 %v39, 122
    %v41 = vpop.permute.xlu0 %40
    %vm42 = vcmask 7168
    %s43 = scalar_lea.vmem %s1, 6
    %44 = vst.msk [vmem:[%s43] ss:$16 sm:$0x3] %vm42, %v41
    %v45 = vld [vmem:[#allocation0] sm:$0x3]
    %46 = vrot.lane.b32.xlu0 %v45, 121
    %v47 = vpop.permute.xlu0 %46
    %vm48 = vcmask 7168
    %s49 = scalar_lea.vmem %s1, 7
    %50 = vst.msk [vmem:[%s49] ss:$16 sm:$0x3] %vm48, %v47
    %v51 = vld [vmem:[#allocation0] sm:$0x3]
    %52 = vrot.lane.b32.xlu0 %v51, 120
    %v53 = vpop.permute.xlu0 %52
    %vm54 = vcmask 7168
    %s55 = scalar_lea.vmem %s1, 8
    %56 = vst.msk [vmem:[%s55] ss:$16 sm:$0x3] %vm54, %v53
    %v57 = vld [vmem:[#allocation0] sm:$0x3]
    %58 = vrot.lane.b32.xlu0 %v57, 119
    %v59 = vpop.permute.xlu0 %58
    %vm60 = vcmask 7168
    %s61 = scalar_lea.vmem %s1, 9
    %62 = vst.msk [vmem:[%s61] ss:$16 sm:$0x3] %vm60, %v59
    %v63 = vld [vmem:[#allocation0] sm:$0x3]
    %64 = vrot.lane.b32.xlu0 %v63, 118
    %v65 = vpop.permute.xlu0 %64
    %vm66 = vcmask 7168
    %s67 = scalar_lea.vmem %s1, 10
    %68 = vst.msk [vmem:[%s67] ss:$16 sm:$0x3] %vm66, %v65
    %v69 = vld [vmem:[#allocation0] sm:$0x3]
    %70 = vrot.lane.b32.xlu0 %v69, 117
    %v71 = vpop.permute.xlu0 %70
    %vm72 = vcmask 7168
    %s73 = scalar_lea.vmem %s1, 11
    %74 = vst.msk [vmem:[%s73] ss:$16 sm:$0x3] %vm72, %v71
    %v75 = vld [vmem:[#allocation0] sm:$0x3]
    %76 = vrot.lane.b32.xlu0 %v75, 116
    %v77 = vpop.permute.xlu0 %76
    %vm78 = vcmask 7168
    %s79 = scalar_lea.vmem %s1, 12
    %80 = vst.msk [vmem:[%s79] ss:$16 sm:$0x3] %vm78, %v77
    %v81 = vld [vmem:[#allocation0] sm:$0x3]
    %82 = vrot.lane.b32.xlu0 %v81, 115
    %v83 = vpop.permute.xlu0 %82
    %vm84 = vcmask 7168
    %s85 = scalar_lea.vmem %s1, 13
    %86 = vst.msk [vmem:[%s85] ss:$16 sm:$0x3] %vm84, %v83
    %v87 = vld [vmem:[#allocation0] sm:$0x3]
    %88 = vrot.lane.b32.xlu0 %v87, 114
    %v89 = vpop.permute.xlu0 %88
    %vm90 = vcmask 7168
    %s91 = scalar_lea.vmem %s1, 14
    %92 = vst.msk [vmem:[%s91] ss:$16 sm:$0x3] %vm90, %v89
    %v93 = vld [vmem:[#allocation0] sm:$0x3]
    %94 = vrot.lane.b32.xlu0 %v93, 113
    %v95 = vpop.permute.xlu0 %94
    %vm96 = vcmask 7168
    %s97 = scalar_lea.vmem %s1, 15
    %98 = vst.msk [vmem:[%s97] ss:$16 sm:$0x3] %vm96, %v95

// kernel: fftransformer_forward.1
$region0: #{fftransformer_forward.1}
  #allocation0 [shape = 'u32[]', space=smem, size = 0x4, offset = 0x4, fixed_abs, tag = 'smem constant byte address 0x4 - core index']
  #allocation1 [shape = 'u32[72,128]{1,0:T(1,128)}', space=vmem, size = 0x9000, scoped, tag = 'internal scratch']
  #allocation2 [shape = 'f32[32,32]{1,0:T(8,128)}', space=vmem, size = 0x4000, scoped, tag = 'scratch operand']
  #allocation3 [shape = 'f32[1,1]{1,0:T(1,128)S(1)}', space=vmem, size = 0x200, scoped, tag = 'scoped memory for fftransformer_forward.1']
  %s0 = inlined_call_operand.vmem [shape: f32[32,32], index: 0, kind: input, shape index: {}]
  %s1 = inlined_call_operand.vmem [shape: f32[32,32], index: 1, kind: input, shape index: {}]
  %s2 = inlined_call_operand.vmem [shape: f32[32,1], index: 2, kind: input, shape index: {}]
  %s3 = inlined_call_operand.vmem [shape: f32[2,1,16], index: 3, kind: input, shape index: {}]
  %s4 = inlined_call_operand.vmem [shape: f32[32,1], index: 4, kind: input, shape index: {}]
  %s5 = inlined_call_operand.vmem [shape: f32[2,32,96], index: 5, kind: input, shape index: {}]
  %s6 = inlined_call_operand.vmem [shape: f32[2,1,96], index: 6, kind: input, shape index: {}]
  %s7 = inlined_call_operand.vmem [shape: f32[2,32,32], index: 7, kind: input, shape index: {}]
  %s8 = inlined_call_operand.vmem [shape: f32[2,1,32], index: 8, kind: input, shape index: {}]
  %s9 = inlined_call_operand.vmem [shape: f32[2,1,32], index: 9, kind: input, shape index: {}]
  %s10 = inlined_call_operand.vmem [shape: f32[2,3,32,64], index: 10, kind: input, shape index: {}]
  %s11 = inlined_call_operand.vmem [shape: f32[2,1,64], index: 11, kind: input, shape index: {}]
  %s12 = inlined_call_operand.vmem [shape: f32[2,3,64,32], index: 12, kind: input, shape index: {}]
  %s13 = inlined_call_operand.vmem [shape: f32[2,1,32], index: 13, kind: input, shape index: {}]
  %s14 = inlined_call_operand.vmem [shape: f32[2,1,32], index: 14, kind: input, shape index: {}]
  %s15 = inlined_call_operand.vmem [shape: f32[2,1,32], index: 15, kind: input, shape index: {}]
  %s16 = inlined_call_operand.vmem [shape: f32[32,1], index: 16, kind: input, shape index: {}]
  %s17 = inlined_call_operand.<no memory space> [shape: f32[1,1], index: 17, kind: input, shape index: {}]
  %s18 = inlined_call_operand.vmem [shape: f32[32,1], index: 18, kind: output, shape index: {}]
  %s19 = sld [smem:[#allocation0]]
  $region113: #{fftransformer_forward.1} parent=0
    _
  %s21 = ssub.s32 1, %s19
  %s22 = scalar_select 0, %s21, %s19
  %v23 = vstv %s17
  %24 = vst [vmem:[#allocation3] sm:$0x1] %v23
  loop: start=0, step=1, limit=4
  $region2: #{fftransformer_forward.1} parent=0 // loop_pre_header
    _
  $region3: #{fftransformer_forward.1} parent=0 // loop_header
    %s26 = sphi 0, %s30
    %p27 = scmp.ge.s32.totalorder %s26, 4
    %s34 = sphi 0, %s34
    %s36 = sphi 0, %s34
    %s37 = sphi 0, %s36
    %s51 = sphi 0, %s37
    %s55 = sphi 0, %s55
    %s57 = sphi 0, %s55
    %s58 = sphi 0, %s57
    %s72 = sphi 0, %s58
    %s76 = sphi 0, %s76
    %s78 = sphi 0, %s76
    %s79 = sphi 0, %s78
    %s93 = sphi 0, %s79
    %s97 = sphi 0, %s97
    %s99 = sphi 0, %s97
    %s100 = sphi 0, %s99
    %s114 = sphi 0, %s100
    %s118 = sphi 0, %s118
    %s120 = sphi 0, %s118
    %s121 = sphi 0, %s120
    %s135 = sphi 0, %s121
    %s141 = sphi 0, %s143
    %s144 = sphi 0, %s141
    %s145 = sphi 0, %s144
    %s161 = sphi 0, %s145
    %s167 = sphi 0, %s169
    %s170 = sphi 0, %s167
    %s171 = sphi 0, %s170
    %s187 = sphi 0, %s171
    %s193 = sphi 0, %s195
    %s196 = sphi 0, %s193
    %s197 = sphi 0, %s196
    %s213 = sphi 0, %s197
    %s219 = sphi 0, %s221
    %s222 = sphi 0, %s219
    %s223 = sphi 0, %s222
    %s239 = sphi 0, %s223
    %s245 = sphi 0, %s247
    %s248 = sphi 0, %s245
    %s249 = sphi 0, %s248
    %s265 = sphi 0, %s249
    %s271 = sphi 0, %s273
    %s274 = sphi 0, %s271
    %s275 = sphi 0, %s274
    %s291 = sphi 0, %s275
    %s297 = sphi 0, %s299
    %s300 = sphi 0, %s297
    %s301 = sphi 0, %s300
    %s317 = sphi 0, %s301
    %s323 = sphi 0, %s325
    %s326 = sphi 0, %s323
    %s327 = sphi 0, %s326
    %s343 = sphi 0, %s327
    %s349 = sphi 0, %s351
    %s352 = sphi 0, %s349
    %s353 = sphi 0, %s352
    %s369 = sphi 0, %s353
    %s375 = sphi 0, %s377
    %s378 = sphi 0, %s375
    %s379 = sphi 0, %s378
    %s395 = sphi 0, %s379
    %s401 = sphi 0, %s403
    %s404 = sphi 0, %s401
    %s405 = sphi 0, %s404
    %s421 = sphi 0, %s405
    %s425 = sphi 0, %s425
    %s427 = sphi 0, %s425
    %s428 = sphi 0, %s427
    %s442 = sphi 0, %s428
    %s446 = sphi 0, %s446
    %s448 = sphi 0, %s446
    %s449 = sphi 0, %s448
    %s463 = sphi 0, %s449
    %s467 = sphi 0, %s467
    %s469 = sphi 0, %s467
    %s470 = sphi 0, %s469
    %s484 = sphi 0, %s470
  $region4: #{fftransformer_forward.1} parent=0 // loop_header_branch
    %29 = sbr.rel (%p27) target = $region8
  $region5: #{fftransformer_forward.1} parent=0 // loop_body
    %s31 = ssub.s32 %s26, 1
    %s32 = ssub.s32 %s26, 2
    %s33 = sadd.s32 %s26, 1
    %s35 = sadd.s32 %s34, 1
    %p38 = scmp.eq.s32.totalorder %s26, 1
    %p39 = scmp.ne.s32.totalorder %s34, %s36
    %p40 = scmp.eq.s32.totalorder %s26, 0
    %p41 = por %p39, %p40
    %p42 = scmp.ne.s32.totalorder %s34, %s36
    %p43 = scmp.eq.s32.totalorder %s31, 1
    %p44 = por %p42, %p43
    %p45 = scmp.ne.s32.totalorder %s36, %s37
    %p46 = scmp.eq.s32.totalorder %s31, 0
    %p47 = por %p45, %p46
    %p48 = scmp.ne.s32.totalorder %s36, %s37
    %p49 = scmp.eq.s32.totalorder %s32, 1
    %p50 = por %p48, %p49
    %p52 = scmp.ne.s32.totalorder %s37, %s51
    %p53 = scmp.eq.s32.totalorder %s32, 0
    %p54 = por %p52, %p53
    %s56 = sadd.s32 %s55, 1
    %p59 = scmp.eq.s32.totalorder %s26, 1
    %p60 = scmp.ne.s32.totalorder %s55, %s57
    %p61 = scmp.eq.s32.totalorder %s26, 0
    %p62 = por %p60, %p61
    %p63 = scmp.ne.s32.totalorder %s55, %s57
    %p64 = scmp.eq.s32.totalorder %s31, 1
    %p65 = por %p63, %p64
    %p66 = scmp.ne.s32.totalorder %s57, %s58
    %p67 = scmp.eq.s32.totalorder %s31, 0
    %p68 = por %p66, %p67
    %p69 = scmp.ne.s32.totalorder %s57, %s58
    %p70 = scmp.eq.s32.totalorder %s32, 1
    %p71 = por %p69, %p70
    %p73 = scmp.ne.s32.totalorder %s58, %s72
    %p74 = scmp.eq.s32.totalorder %s32, 0
    %p75 = por %p73, %p74
    %s77 = sadd.s32 %s76, 1
    %p80 = scmp.eq.s32.totalorder %s26, 1
    %p81 = scmp.ne.s32.totalorder %s76, %s78
    %p82 = scmp.eq.s32.totalorder %s26, 0
    %p83 = por %p81, %p82
    %p84 = scmp.ne.s32.totalorder %s76, %s78
    %p85 = scmp.eq.s32.totalorder %s31, 1
    %p86 = por %p84, %p85
    %p87 = scmp.ne.s32.totalorder %s78, %s79
    %p88 = scmp.eq.s32.totalorder %s31, 0
    %p89 = por %p87, %p88
    %p90 = scmp.ne.s32.totalorder %s78, %s79
    %p91 = scmp.eq.s32.totalorder %s32, 1
    %p92 = por %p90, %p91
    %p94 = scmp.ne.s32.totalorder %s79, %s93
    %p95 = scmp.eq.s32.totalorder %s32, 0
    %p96 = por %p94, %p95
    %s98 = sadd.s32 %s97, 1
    %p101 = scmp.eq.s32.totalorder %s26, 1
    %p102 = scmp.ne.s32.totalorder %s97, %s99
    %p103 = scmp.eq.s32.totalorder %s26, 0
    %p104 = por %p102, %p103
    %p105 = scmp.ne.s32.totalorder %s97, %s99
    %p106 = scmp.eq.s32.totalorder %s31, 1
    %p107 = por %p105, %p106
    %p108 = scmp.ne.s32.totalorder %s99, %s100
    %p109 = scmp.eq.s32.totalorder %s31, 0
    %p110 = por %p108, %p109
    %p111 = scmp.ne.s32.totalorder %s99, %s100
    %p112 = scmp.eq.s32.totalorder %s32, 1
    %p113 = por %p111, %p112
    %p115 = scmp.ne.s32.totalorder %s100, %s114
    %p116 = scmp.eq.s32.totalorder %s32, 0
    %p117 = por %p115, %p116
    %s119 = sadd.s32 %s118, 1
    %p122 = scmp.eq.s32.totalorder %s26, 1
    %p123 = scmp.ne.s32.totalorder %s118, %s120
    %p124 = scmp.eq.s32.totalorder %s26, 0
    %p125 = por %p123, %p124
    %p126 = scmp.ne.s32.totalorder %s118, %s120
    %p127 = scmp.eq.s32.totalorder %s31, 1
    %p128 = por %p126, %p127
    %p129 = scmp.ne.s32.totalorder %s120, %s121
    %p130 = scmp.eq.s32.totalorder %s31, 0
    %p131 = por %p129, %p130
    %p132 = scmp.ne.s32.totalorder %s120, %s121
    %p133 = scmp.eq.s32.totalorder %s32, 1
    %p134 = por %p132, %p133
    %p136 = scmp.ne.s32.totalorder %s121, %s135
    %p137 = scmp.eq.s32.totalorder %s32, 0
    %p138 = por %p136, %p137
    %s139 = ssub.s32 %s26, %s33
    %p140 = scmp.eq.s32.totalorder %s139, 0
    %s142 = sadd.s32 %s141, 1
    %s143 = scalar_select %p140, %s141, %s142
    %p146 = pneg %p140
    %p147 = scmp.eq.s32.totalorder %s26, 1
    %p148 = por %p146, %p147
    %p149 = scmp.ne.s32.totalorder %s141, %s144
    %p150 = scmp.eq.s32.totalorder %s26, 0
    %p151 = por %p149, %p150
    %p152 = scmp.ne.s32.totalorder %s141, %s144
    %p153 = scmp.eq.s32.totalorder %s31, 1
    %p154 = por %p152, %p153
    %p155 = scmp.ne.s32.totalorder %s144, %s145
    %p156 = scmp.eq.s32.totalorder %s31, 0
    %p157 = por %p155, %p156
    %p158 = scmp.ne.s32.totalorder %s144, %s145
    %p159 = scmp.eq.s32.totalorder %s32, 1
    %p160 = por %p158, %p159
    %p162 = scmp.ne.s32.totalorder %s145, %s161
    %p163 = scmp.eq.s32.totalorder %s32, 0
    %p164 = por %p162, %p163
    %s165 = ssub.s32 %s26, %s33
    %p166 = scmp.eq.s32.totalorder %s165, 0
    %s168 = sadd.s32 %s167, 1
    %s169 = scalar_select %p166, %s167, %s168
    %p172 = pneg %p166
    %p173 = scmp.eq.s32.totalorder %s26, 1
    %p174 = por %p172, %p173
    %p175 = scmp.ne.s32.totalorder %s167, %s170
    %p176 = scmp.eq.s32.totalorder %s26, 0
    %p177 = por %p175, %p176
    %p178 = scmp.ne.s32.totalorder %s167, %s170
    %p179 = scmp.eq.s32.totalorder %s31, 1
    %p180 = por %p178, %p179
    %p181 = scmp.ne.s32.totalorder %s170, %s171
    %p182 = scmp.eq.s32.totalorder %s31, 0
    %p183 = por %p181, %p182
    %p184 = scmp.ne.s32.totalorder %s170, %s171
    %p185 = scmp.eq.s32.totalorder %s32, 1
    %p186 = por %p184, %p185
    %p188 = scmp.ne.s32.totalorder %s171, %s187
    %p189 = scmp.eq.s32.totalorder %s32, 0
    %p190 = por %p188, %p189
    %s191 = ssub.s32 %s26, %s33
    %p192 = scmp.eq.s32.totalorder %s191, 0
    %s194 = sadd.s32 %s193, 1
    %s195 = scalar_select %p192, %s193, %s194
    %p198 = pneg %p192
    %p199 = scmp.eq.s32.totalorder %s26, 1
    %p200 = por %p198, %p199
    %p201 = scmp.ne.s32.totalorder %s193, %s196
    %p202 = scmp.eq.s32.totalorder %s26, 0
    %p203 = por %p201, %p202
    %p204 = scmp.ne.s32.totalorder %s193, %s196
    %p205 = scmp.eq.s32.totalorder %s31, 1
    %p206 = por %p204, %p205
    %p207 = scmp.ne.s32.totalorder %s196, %s197
    %p208 = scmp.eq.s32.totalorder %s31, 0
    %p209 = por %p207, %p208
    %p210 = scmp.ne.s32.totalorder %s196, %s197
    %p211 = scmp.eq.s32.totalorder %s32, 1
    %p212 = por %p210, %p211
    %p214 = scmp.ne.s32.totalorder %s197, %s213
    %p215 = scmp.eq.s32.totalorder %s32, 0
    %p216 = por %p214, %p215
    %s217 = ssub.s32 %s26, %s33
    %p218 = scmp.eq.s32.totalorder %s217, 0
    %s220 = sadd.s32 %s219, 1
    %s221 = scalar_select %p218, %s219, %s220
    %p224 = pneg %p218
    %p225 = scmp.eq.s32.totalorder %s26, 1
    %p226 = por %p224, %p225
    %p227 = scmp.ne.s32.totalorder %s219, %s222
    %p228 = scmp.eq.s32.totalorder %s26, 0
    %p229 = por %p227, %p228
    %p230 = scmp.ne.s32.totalorder %s219, %s222
    %p231 = scmp.eq.s32.totalorder %s31, 1
    %p232 = por %p230, %p231
    %p233 = scmp.ne.s32.totalorder %s222, %s223
    %p234 = scmp.eq.s32.totalorder %s31, 0
    %p235 = por %p233, %p234
    %p236 = scmp.ne.s32.totalorder %s222, %s223
    %p237 = scmp.eq.s32.totalorder %s32, 1
    %p238 = por %p236, %p237
    %p240 = scmp.ne.s32.totalorder %s223, %s239
    %p241 = scmp.eq.s32.totalorder %s32, 0
    %p242 = por %p240, %p241
    %s243 = ssub.s32 %s26, %s33
    %p244 = scmp.eq.s32.totalorder %s243, 0
    %s246 = sadd.s32 %s245, 1
    %s247 = scalar_select %p244, %s245, %s246
    %p250 = pneg %p244
    %p251 = scmp.eq.s32.totalorder %s26, 1
    %p252 = por %p250, %p251
    %p253 = scmp.ne.s32.totalorder %s245, %s248
    %p254 = scmp.eq.s32.totalorder %s26, 0
    %p255 = por %p253, %p254
    %p256 = scmp.ne.s32.totalorder %s245, %s248
    %p257 = scmp.eq.s32.totalorder %s31, 1
    %p258 = por %p256, %p257
    %p259 = scmp.ne.s32.totalorder %s248, %s249
    %p260 = scmp.eq.s32.totalorder %s31, 0
    %p261 = por %p259, %p260
    %p262 = scmp.ne.s32.totalorder %s248, %s249
    %p263 = scmp.eq.s32.totalorder %s32, 1
    %p264 = por %p262, %p263
    %p266 = scmp.ne.s32.totalorder %s249, %s265
    %p267 = scmp.eq.s32.totalorder %s32, 0
    %p268 = por %p266, %p267
    %s269 = ssub.s32 %s26, %s33
    %p270 = scmp.eq.s32.totalorder %s269, 0
    %s272 = sadd.s32 %s271, 1
    %s273 = scalar_select %p270, %s271, %s272
    %p276 = pneg %p270
    %p277 = scmp.eq.s32.totalorder %s26, 1
    %p278 = por %p276, %p277
    %p279 = scmp.ne.s32.totalorder %s271, %s274
    %p280 = scmp.eq.s32.totalorder %s26, 0
    %p281 = por %p279, %p280
    %p282 = scmp.ne.s32.totalorder %s271, %s274
    %p283 = scmp.eq.s32.totalorder %s31, 1
    %p284 = por %p282, %p283
    %p285 = scmp.ne.s32.totalorder %s274, %s275
    %p286 = scmp.eq.s32.totalorder %s31, 0
    %p287 = por %p285, %p286
    %p288 = scmp.ne.s32.totalorder %s274, %s275
    %p289 = scmp.eq.s32.totalorder %s32, 1
    %p290 = por %p288, %p289
    %p292 = scmp.ne.s32.totalorder %s275, %s291
    %p293 = scmp.eq.s32.totalorder %s32, 0
    %p294 = por %p292, %p293
    %s295 = ssub.s32 %s26, %s33
    %p296 = scmp.eq.s32.totalorder %s295, 0
    %s298 = sadd.s32 %s297, 1
    %s299 = scalar_select %p296, %s297, %s298
    %p302 = pneg %p296
    %p303 = scmp.eq.s32.totalorder %s26, 1
    %p304 = por %p302, %p303
    %p305 = scmp.ne.s32.totalorder %s297, %s300
    %p306 = scmp.eq.s32.totalorder %s26, 0
    %p307 = por %p305, %p306
    %p308 = scmp.ne.s32.totalorder %s297, %s300
    %p309 = scmp.eq.s32.totalorder %s31, 1
    %p310 = por %p308, %p309
    %p311 = scmp.ne.s32.totalorder %s300, %s301
    %p312 = scmp.eq.s32.totalorder %s31, 0
    %p313 = por %p311, %p312
    %p314 = scmp.ne.s32.totalorder %s300, %s301
    %p315 = scmp.eq.s32.totalorder %s32, 1
    %p316 = por %p314, %p315
    %p318 = scmp.ne.s32.totalorder %s301, %s317
    %p319 = scmp.eq.s32.totalorder %s32, 0
    %p320 = por %p318, %p319
    %s321 = ssub.s32 %s26, %s33
    %p322 = scmp.eq.s32.totalorder %s321, 0
    %s324 = sadd.s32 %s323, 1
    %s325 = scalar_select %p322, %s323, %s324
    %p328 = pneg %p322
    %p329 = scmp.eq.s32.totalorder %s26, 1
    %p330 = por %p328, %p329
    %p331 = scmp.ne.s32.totalorder %s323, %s326
    %p332 = scmp.eq.s32.totalorder %s26, 0
    %p333 = por %p331, %p332
    %p334 = scmp.ne.s32.totalorder %s323, %s326
    %p335 = scmp.eq.s32.totalorder %s31, 1
    %p336 = por %p334, %p335
    %p337 = scmp.ne.s32.totalorder %s326, %s327
    %p338 = scmp.eq.s32.totalorder %s31, 0
    %p339 = por %p337, %p338
    %p340 = scmp.ne.s32.totalorder %s326, %s327
    %p341 = scmp.eq.s32.totalorder %s32, 1
    %p342 = por %p340, %p341
    %p344 = scmp.ne.s32.totalorder %s327, %s343
    %p345 = scmp.eq.s32.totalorder %s32, 0
    %p346 = por %p344, %p345
    %s347 = ssub.s32 %s26, %s33
    %p348 = scmp.eq.s32.totalorder %s347, 0
    %s350 = sadd.s32 %s349, 1
    %s351 = scalar_select %p348, %s349, %s350
    %p354 = pneg %p348
    %p355 = scmp.eq.s32.totalorder %s26, 1
    %p356 = por %p354, %p355
    %p357 = scmp.ne.s32.totalorder %s349, %s352
    %p358 = scmp.eq.s32.totalorder %s26, 0
    %p359 = por %p357, %p358
    %p360 = scmp.ne.s32.totalorder %s349, %s352
    %p361 = scmp.eq.s32.totalorder %s31, 1
    %p362 = por %p360, %p361
    %p363 = scmp.ne.s32.totalorder %s352, %s353
    %p364 = scmp.eq.s32.totalorder %s31, 0
    %p365 = por %p363, %p364
    %p366 = scmp.ne.s32.totalorder %s352, %s353
    %p367 = scmp.eq.s32.totalorder %s32, 1
    %p368 = por %p366, %p367
    %p370 = scmp.ne.s32.totalorder %s353, %s369
    %p371 = scmp.eq.s32.totalorder %s32, 0
    %p372 = por %p370, %p371
    %s373 = ssub.s32 %s26, %s33
    %p374 = scmp.eq.s32.totalorder %s373, 0
    %s376 = sadd.s32 %s375, 1
    %s377 = scalar_select %p374, %s375, %s376
    %p380 = pneg %p374
    %p381 = scmp.eq.s32.totalorder %s26, 1
    %p382 = por %p380, %p381
    %p383 = scmp.ne.s32.totalorder %s375, %s378
    %p384 = scmp.eq.s32.totalorder %s26, 0
    %p385 = por %p383, %p384
    %p386 = scmp.ne.s32.totalorder %s375, %s378
    %p387 = scmp.eq.s32.totalorder %s31, 1
    %p388 = por %p386, %p387
    %p389 = scmp.ne.s32.totalorder %s378, %s379
    %p390 = scmp.eq.s32.totalorder %s31, 0
    %p391 = por %p389, %p390
    %p392 = scmp.ne.s32.totalorder %s378, %s379
    %p393 = scmp.eq.s32.totalorder %s32, 1
    %p394 = por %p392, %p393
    %p396 = scmp.ne.s32.totalorder %s379, %s395
    %p397 = scmp.eq.s32.totalorder %s32, 0
    %p398 = por %p396, %p397
    %s399 = ssub.s32 %s26, %s33
    %p400 = scmp.eq.s32.totalorder %s399, 0
    %s402 = sadd.s32 %s401, 1
    %s403 = scalar_select %p400, %s401, %s402
    %p406 = pneg %p400
    %p407 = scmp.eq.s32.totalorder %s26, 1
    %p408 = por %p406, %p407
    %p409 = scmp.ne.s32.totalorder %s401, %s404
    %p410 = scmp.eq.s32.totalorder %s26, 0
    %p411 = por %p409, %p410
    %p412 = scmp.ne.s32.totalorder %s401, %s404
    %p413 = scmp.eq.s32.totalorder %s31, 1
    %p414 = por %p412, %p413
    %p415 = scmp.ne.s32.totalorder %s404, %s405
    %p416 = scmp.eq.s32.totalorder %s31, 0
    %p417 = por %p415, %p416
    %p418 = scmp.ne.s32.totalorder %s404, %s405
    %p419 = scmp.eq.s32.totalorder %s32, 1
    %p420 = por %p418, %p419
    %p422 = scmp.ne.s32.totalorder %s405, %s421
    %p423 = scmp.eq.s32.totalorder %s32, 0
    %p424 = por %p422, %p423
    %s426 = sadd.s32 %s425, 1
    %p429 = scmp.eq.s32.totalorder %s26, 1
    %p430 = scmp.ne.s32.totalorder %s425, %s427
    %p431 = scmp.eq.s32.totalorder %s26, 0
    %p432 = por %p430, %p431
    %p433 = scmp.ne.s32.totalorder %s425, %s427
    %p434 = scmp.eq.s32.totalorder %s31, 1
    %p435 = por %p433, %p434
    %p436 = scmp.ne.s32.totalorder %s427, %s428
    %p437 = scmp.eq.s32.totalorder %s31, 0
    %p438 = por %p436, %p437
    %p439 = scmp.ne.s32.totalorder %s427, %s428
    %p440 = scmp.eq.s32.totalorder %s32, 1
    %p441 = por %p439, %p440
    %p443 = scmp.ne.s32.totalorder %s428, %s442
    %p444 = scmp.eq.s32.totalorder %s32, 0
    %p445 = por %p443, %p444
    %s447 = sadd.s32 %s446, 1
    %p450 = scmp.eq.s32.totalorder %s26, 1
    %p451 = scmp.ne.s32.totalorder %s446, %s448
    %p452 = scmp.eq.s32.totalorder %s26, 0
    %p453 = por %p451, %p452
    %p454 = scmp.ne.s32.totalorder %s446, %s448
    %p455 = scmp.eq.s32.totalorder %s31, 1
    %p456 = por %p454, %p455
    %p457 = scmp.ne.s32.totalorder %s448, %s449
    %p458 = scmp.eq.s32.totalorder %s31, 0
    %p459 = por %p457, %p458
    %p460 = scmp.ne.s32.totalorder %s448, %s449
    %p461 = scmp.eq.s32.totalorder %s32, 1
    %p462 = por %p460, %p461
    %p464 = scmp.ne.s32.totalorder %s449, %s463
    %p465 = scmp.eq.s32.totalorder %s32, 0
    %p466 = por %p464, %p465
    %s468 = sadd.s32 %s467, 1
    %p471 = scmp.eq.s32.totalorder %s26, 1
    %p472 = scmp.ne.s32.totalorder %s467, %s469
    %p473 = scmp.eq.s32.totalorder %s26, 0
    %p474 = por %p472, %p473
    %p475 = scmp.ne.s32.totalorder %s467, %s469
    %p476 = scmp.eq.s32.totalorder %s31, 1
    %p477 = por %p475, %p476
    %p478 = scmp.ne.s32.totalorder %s469, %s470
    %p479 = scmp.eq.s32.totalorder %s31, 0
    %p480 = por %p478, %p479
    %p481 = scmp.ne.s32.totalorder %s469, %s470
    %p482 = scmp.eq.s32.totalorder %s32, 1
    %p483 = por %p481, %p482
    %p485 = scmp.ne.s32.totalorder %s470, %s484
    %p486 = scmp.eq.s32.totalorder %s32, 0
    %p487 = por %p485, %p486
    %p488 = scmp.le.s32.totalorder 1, %s26
    %p489 = scmp.lt.s32.totalorder %s26, 3
    %p490 = pnand %p488, %p489
    %p491 = pneg %p490
    // Predicated region
    $region9: #{fftransformer_forward.1} parent=5 // pred_check
      _
    $region10: #{fftransformer_forward.1} parent=5 // pred_check_branch
      %493 = sbr.rel (%p490) target = $region12
    $region11: #{fftransformer_forward.1} parent=5 // pred_region
      %s494 = ssub.s32 %s26, 1
      // Predicated region
      $region13: #{fftransformer_forward.1} parent=11 // pred_check
        %p495 = pneg %p47
      $region14: #{fftransformer_forward.1} parent=11 // pred_check_branch
        %497 = sbr.rel (%p495) target = $region16
      $region15: #{fftransformer_forward.1} parent=11 // pred_region
        _
      $region16: #{fftransformer_forward.1} parent=11 // pred_fallthru
        _
      // Predicated region
      $region17: #{fftransformer_forward.1} parent=11 // pred_check
        %p498 = pneg %p68
      $region18: #{fftransformer_forward.1} parent=11 // pred_check_branch
        %500 = sbr.rel (%p498) target = $region20
      $region19: #{fftransformer_forward.1} parent=11 // pred_region
        _
      $region20: #{fftransformer_forward.1} parent=11 // pred_fallthru
        _
      // Predicated region
      $region21: #{fftransformer_forward.1} parent=11 // pred_check
        %p501 = pneg %p89
      $region22: #{fftransformer_forward.1} parent=11 // pred_check_branch
        %503 = sbr.rel (%p501) target = $region24
      $region23: #{fftransformer_forward.1} parent=11 // pred_region
        _
      $region24: #{fftransformer_forward.1} parent=11 // pred_fallthru
        _
      // Predicated region
      $region25: #{fftransformer_forward.1} parent=11 // pred_check
        %p504 = pneg %p110
      $region26: #{fftransformer_forward.1} parent=11 // pred_check_branch
        %506 = sbr.rel (%p504) target = $region28
      $region27: #{fftransformer_forward.1} parent=11 // pred_region
        _
      $region28: #{fftransformer_forward.1} parent=11 // pred_fallthru
        _
      // Predicated region
      $region29: #{fftransformer_forward.1} parent=11 // pred_check
        %p507 = pneg %p131
      $region30: #{fftransformer_forward.1} parent=11 // pred_check_branch
        %509 = sbr.rel (%p507) target = $region32
      $region31: #{fftransformer_forward.1} parent=11 // pred_region
        _
      $region32: #{fftransformer_forward.1} parent=11 // pred_fallthru
        _
      // Predicated region
      $region33: #{fftransformer_forward.1} parent=11 // pred_check
        %p510 = pneg %p438
      $region34: #{fftransformer_forward.1} parent=11 // pred_check_branch
        %512 = sbr.rel (%p510) target = $region36
      $region35: #{fftransformer_forward.1} parent=11 // pred_region
        _
      $region36: #{fftransformer_forward.1} parent=11 // pred_fallthru
        _
      // Predicated region
      $region37: #{fftransformer_forward.1} parent=11 // pred_check
        %p513 = pneg %p459
      $region38: #{fftransformer_forward.1} parent=11 // pred_check_branch
        %515 = sbr.rel (%p513) target = $region40
      $region39: #{fftransformer_forward.1} parent=11 // pred_region
        _
      $region40: #{fftransformer_forward.1} parent=11 // pred_fallthru
        _
    $region12: #{fftransformer_forward.1} parent=5 // pred_fallthru
      _
    %p516 = scmp.lt.s32.totalorder %s26, 2
    // Predicated region
    $region41: #{fftransformer_forward.1} parent=5 // pred_check
      %p517 = pneg %p516
    $region42: #{fftransformer_forward.1} parent=5 // pred_check_branch
      %519 = sbr.rel (%p517) target = $region44
    $region43: #{fftransformer_forward.1} parent=5 // pred_region
      // Predicated region
      $region45: #{fftransformer_forward.1} parent=43 // pred_check
        %p520 = pneg %p151
      $region46: #{fftransformer_forward.1} parent=43 // pred_check_branch
        %522 = sbr.rel (%p520) target = $region48
      $region47: #{fftransformer_forward.1} parent=43 // pred_region
        %p523 = scmp.lt.s32.totalorder %s26, 1
        %s524 = scalar_select %p523, %s26, 1
        %s525 = smul.addr %s524, 4
        %s526 = smul.addr %s525, 8
        %s527 = scalar_lea.vmem %s5, %s526
      $region48: #{fftransformer_forward.1} parent=43 // pred_fallthru
        _
      // Predicated region
      $region49: #{fftransformer_forward.1} parent=43 // pred_check
        %p528 = pneg %p177
      $region50: #{fftransformer_forward.1} parent=43 // pred_check_branch
        %530 = sbr.rel (%p528) target = $region52
      $region51: #{fftransformer_forward.1} parent=43 // pred_region
        %p531 = scmp.lt.s32.totalorder %s26, 1
        %s532 = scalar_select %p531, %s26, 1
        %s533 = scalar_lea.vmem %s6, %s532
      $region52: #{fftransformer_forward.1} parent=43 // pred_fallthru
        _
      // Predicated region
      $region53: #{fftransformer_forward.1} parent=43 // pred_check
        %p534 = pneg %p203
      $region54: #{fftransformer_forward.1} parent=43 // pred_check_branch
        %536 = sbr.rel (%p534) target = $region56
      $region55: #{fftransformer_forward.1} parent=43 // pred_region
        %p537 = scmp.lt.s32.totalorder %s26, 1
        %s538 = scalar_select %p537, %s26, 1
        %s539 = smul.addr %s538, 4
        %s540 = smul.addr %s539, 8
        %s541 = scalar_lea.vmem %s7, %s540
      $region56: #{fftransformer_forward.1} parent=43 // pred_fallthru
        _
      // Predicated region
      $region57: #{fftransformer_forward.1} parent=43 // pred_check
        %p542 = pneg %p229
      $region58: #{fftransformer_forward.1} parent=43 // pred_check_branch
        %544 = sbr.rel (%p542) target = $region60
      $region59: #{fftransformer_forward.1} parent=43 // pred_region
        %p545 = scmp.lt.s32.totalorder %s26, 1
        %s546 = scalar_select %p545, %s26, 1
        %s547 = scalar_lea.vmem %s8, %s546
      $region60: #{fftransformer_forward.1} parent=43 // pred_fallthru
        _
      // Predicated region
      $region61: #{fftransformer_forward.1} parent=43 // pred_check
        %p548 = pneg %p255
      $region62: #{fftransformer_forward.1} parent=43 // pred_check_branch
        %550 = sbr.rel (%p548) target = $region64
      $region63: #{fftransformer_forward.1} parent=43 // pred_region
        %p551 = scmp.lt.s32.totalorder %s26, 1
        %s552 = scalar_select %p551, %s26, 1
        %s553 = scalar_lea.vmem %s9, %s552
      $region64: #{fftransformer_forward.1} parent=43 // pred_fallthru
        _
      // Predicated region
      $region65: #{fftransformer_forward.1} parent=43 // pred_check
        %p554 = pneg %p281
      $region66: #{fftransformer_forward.1} parent=43 // pred_check_branch
        %556 = sbr.rel (%p554) target = $region68
      $region67: #{fftransformer_forward.1} parent=43 // pred_region
        %p557 = scmp.lt.s32.totalorder %s26, 1
        %s558 = scalar_select %p557, %s26, 1
        %s559 = smul.addr %s558, 12
        %s560 = smul.addr %s559, 8
        %s561 = scalar_lea.vmem %s10, %s560
      $region68: #{fftransformer_forward.1} parent=43 // pred_fallthru
        _
      // Predicated region
      $region69: #{fftransformer_forward.1} parent=43 // pred_check
        %p562 = pneg %p307
      $region70: #{fftransformer_forward.1} parent=43 // pred_check_branch
        %564 = sbr.rel (%p562) target = $region72
      $region71: #{fftransformer_forward.1} parent=43 // pred_region
        %p565 = scmp.lt.s32.totalorder %s26, 1
        %s566 = scalar_select %p565, %s26, 1
        %s567 = scalar_lea.vmem %s11, %s566
      $region72: #{fftransformer_forward.1} parent=43 // pred_fallthru
        _
      // Predicated region
      $region73: #{fftransformer_forward.1} parent=43 // pred_check
        %p568 = pneg %p333
      $region74: #{fftransformer_forward.1} parent=43 // pred_check_branch
        %570 = sbr.rel (%p568) target = $region76
      $region75: #{fftransformer_forward.1} parent=43 // pred_region
        %p571 = scmp.lt.s32.totalorder %s26, 1
        %s572 = scalar_select %p571, %s26, 1
        %s573 = smul.addr %s572, 24
        %s574 = smul.addr %s573, 8
        %s575 = scalar_lea.vmem %s12, %s574
      $region76: #{fftransformer_forward.1} parent=43 // pred_fallthru
        _
      // Predicated region
      $region77: #{fftransformer_forward.1} parent=43 // pred_check
        %p576 = pneg %p359
      $region78: #{fftransformer_forward.1} parent=43 // pred_check_branch
        %578 = sbr.rel (%p576) target = $region80
      $region79: #{fftransformer_forward.1} parent=43 // pred_region
        %p579 = scmp.lt.s32.totalorder %s26, 1
        %s580 = scalar_select %p579, %s26, 1
        %s581 = scalar_lea.vmem %s13, %s580
      $region80: #{fftransformer_forward.1} parent=43 // pred_fallthru
        _
      // Predicated region
      $region81: #{fftransformer_forward.1} parent=43 // pred_check
        %p582 = pneg %p385
      $region82: #{fftransformer_forward.1} parent=43 // pred_check_branch
        %584 = sbr.rel (%p582) target = $region84
      $region83: #{fftransformer_forward.1} parent=43 // pred_region
        %p585 = scmp.lt.s32.totalorder %s26, 1
        %s586 = scalar_select %p585, %s26, 1
        %s587 = scalar_lea.vmem %s14, %s586
      $region84: #{fftransformer_forward.1} parent=43 // pred_fallthru
        _
      // Predicated region
      $region85: #{fftransformer_forward.1} parent=43 // pred_check
        %p588 = pneg %p411
      $region86: #{fftransformer_forward.1} parent=43 // pred_check_branch
        %590 = sbr.rel (%p588) target = $region88
      $region87: #{fftransformer_forward.1} parent=43 // pred_region
        %p591 = scmp.lt.s32.totalorder %s26, 1
        %s592 = scalar_select %p591, %s26, 1
        %s593 = scalar_lea.vmem %s15, %s592
      $region88: #{fftransformer_forward.1} parent=43 // pred_fallthru
        _
    $region44: #{fftransformer_forward.1} parent=5 // pred_fallthru
      _
    %p594 = scmp.le.s32.totalorder 1, %s26
    %p595 = scmp.lt.s32.totalorder %s26, 3
    %p596 = pnand %p594, %p595
    %p597 = pneg %p596
    // Predicated region
    $region89: #{fftransformer_forward.1} parent=5 // pred_check
      _
    $region90: #{fftransformer_forward.1} parent=5 // pred_check_branch
      %599 = sbr.rel (%p596) target = $region92
    $region91: #{fftransformer_forward.1} parent=5 // pred_region
      %s600 = ssub.s32 %s26, 1
      %p601 = pneg %p47
      %p602 = pneg %p44
      %p603 = pneg %p68
      %p604 = pneg %p65
      %p605 = pneg %p89
      %p606 = pneg %p86
      %p607 = pneg %p110
      %p608 = pneg %p107
      %p609 = pneg %p131
      %p610 = pneg %p128
      %p611 = scmp.lt.s32.totalorder %s31, 1
      %s612 = scalar_select %p611, %s31, 1
      %s613 = smul.addr %s612, 4
      %s614 = smul.addr %s613, 8
      %s615 = scalar_lea.vmem %s5, %s614
      %p616 = pneg %p157
      %p617 = pneg %p154
      %p618 = scmp.lt.s32.totalorder %s31, 1
      %s619 = scalar_select %p618, %s31, 1
      %s620 = scalar_lea.vmem %s6, %s619
      %p621 = pneg %p183
      %p622 = pneg %p180
      %p623 = scmp.lt.s32.totalorder %s31, 1
      %s624 = scalar_select %p623, %s31, 1
      %s625 = smul.addr %s624, 4
      %s626 = smul.addr %s625, 8
      %s627 = scalar_lea.vmem %s7, %s626
      %p628 = pneg %p209
      %p629 = pneg %p206
      %p630 = scmp.lt.s32.totalorder %s31, 1
      %s631 = scalar_select %p630, %s31, 1
      %s632 = scalar_lea.vmem %s8, %s631
      %p633 = pneg %p235
      %p634 = pneg %p232
      %p635 = scmp.lt.s32.totalorder %s31, 1
      %s636 = scalar_select %p635, %s31, 1
      %s637 = scalar_lea.vmem %s9, %s636
      %p638 = pneg %p261
      %p639 = pneg %p258
      %p640 = scmp.lt.s32.totalorder %s31, 1
      %s641 = scalar_select %p640, %s31, 1
      %s642 = smul.addr %s641, 12
      %s643 = smul.addr %s642, 8
      %s644 = scalar_lea.vmem %s10, %s643
      %p645 = pneg %p287
      %p646 = pneg %p284
      %p647 = scmp.lt.s32.totalorder %s31, 1
      %s648 = scalar_select %p647, %s31, 1
      %s649 = scalar_lea.vmem %s11, %s648
      %p650 = pneg %p313
      %p651 = pneg %p310
      %p652 = scmp.lt.s32.totalorder %s31, 1
      %s653 = scalar_select %p652, %s31, 1
      %s654 = smul.addr %s653, 24
      %s655 = smul.addr %s654, 8
      %s656 = scalar_lea.vmem %s12, %s655
      %p657 = pneg %p339
      %p658 = pneg %p336
      %p659 = scmp.lt.s32.totalorder %s31, 1
      %s660 = scalar_select %p659, %s31, 1
      %s661 = scalar_lea.vmem %s13, %s660
      %p662 = pneg %p365
      %p663 = pneg %p362
      %p664 = scmp.lt.s32.totalorder %s31, 1
      %s665 = scalar_select %p664, %s31, 1
      %s666 = scalar_lea.vmem %s14, %s665
      %p667 = pneg %p391
      %p668 = pneg %p388
      %p669 = scmp.lt.s32.totalorder %s31, 1
      %s670 = scalar_select %p669, %s31, 1
      %s671 = scalar_lea.vmem %s15, %s670
      %p672 = pneg %p417
      %p673 = pneg %p414
      %p674 = pneg %p438
      %p675 = pneg %p435
      %p676 = pneg %p459
      %p677 = pneg %p456
      %p678 = pneg %p480
      %p679 = pneg %p477
      %p680 = scmp.lt.s32.totalorder %s31, 1
      %s681 = scalar_select %p680, %s31, 1
      %s682 = smul.addr %s681, 4
      %s683 = smul.addr %s682, 8
      %s684 = scalar_lea.vmem %s5, %s683
      %p685 = scmp.lt.s32.totalorder %s31, 1
      %s686 = scalar_select %p685, %s31, 1
      %s687 = scalar_lea.vmem %s6, %s686
      %p688 = scmp.lt.s32.totalorder %s31, 1
      %s689 = scalar_select %p688, %s31, 1
      %s690 = smul.addr %s689, 4
      %s691 = smul.addr %s690, 8
      %s692 = scalar_lea.vmem %s7, %s691
      %p693 = scmp.lt.s32.totalorder %s31, 1
      %s694 = scalar_select %p693, %s31, 1
      %s695 = scalar_lea.vmem %s8, %s694
      %p696 = scmp.lt.s32.totalorder %s31, 1
      %s697 = scalar_select %p696, %s31, 1
      %s698 = scalar_lea.vmem %s9, %s697
      %p699 = scmp.lt.s32.totalorder %s31, 1
      %s700 = scalar_select %p699, %s31, 1
      %s701 = smul.addr %s700, 12
      %s702 = smul.addr %s701, 8
      %s703 = scalar_lea.vmem %s10, %s702
      %p704 = scmp.lt.s32.totalorder %s31, 1
      %s705 = scalar_select %p704, %s31, 1
      %s706 = scalar_lea.vmem %s11, %s705
      %p707 = scmp.lt.s32.totalorder %s31, 1
      %s708 = scalar_select %p707, %s31, 1
      %s709 = smul.addr %s708, 24
      %s710 = smul.addr %s709, 8
      %s711 = scalar_lea.vmem %s12, %s710
      %p712 = scmp.lt.s32.totalorder %s31, 1
      %s713 = scalar_select %p712, %s31, 1
      %s714 = scalar_lea.vmem %s13, %s713
      %p715 = scmp.lt.s32.totalorder %s31, 1
      %s716 = scalar_select %p715, %s31, 1
      %s717 = scalar_lea.vmem %s14, %s716
      %p718 = scmp.lt.s32.totalorder %s31, 1
      %s719 = scalar_select %p718, %s31, 1
      %s720 = scalar_lea.vmem %s15, %s719
      %v721 = vld [vmem:[%s2] sm:$0xff]
      %v722 = vld [vmem:[%s2 + $0x8] sm:$0xff]
      %v723 = vld [vmem:[%s2 + $0x10] sm:$0xff]
      %v724 = vld [vmem:[%s2 + $0x18] sm:$0xff]
      %v725 = vld [vmem:[%s3] sm:$0x1]
      %v726 = vld [vmem:[%s3 + $0x1] sm:$0x1]
      %p727 = scmp.eq.s32.totalorder %s31, 0
      // Predicated region
      $region93: #{fftransformer_forward.1} parent=91 // pred_check
        %p728 = pneg %p727
      $region94: #{fftransformer_forward.1} parent=91 // pred_check_branch
        %730 = sbr.rel (%p728) target = $region96
      $region95: #{fftransformer_forward.1} parent=91 // pred_region
        %v731 = vld [vmem:[%s0] sm:$0xff]
        %v732 = vld [vmem:[%s0 + $0x8] sm:$0xff]
        %v733 = vld [vmem:[%s0 + $0x10] sm:$0xff]
        %v734 = vld [vmem:[%s0 + $0x18] sm:$0xff]
        %v735 = vld [vmem:[%s1] sm:$0xff]
        %v736 = vld [vmem:[%s1 + $0x8] sm:$0xff]
        %v737 = vld [vmem:[%s1 + $0x10] sm:$0xff]
        %v738 = vld [vmem:[%s1 + $0x18] sm:$0xff]
        %740 = vset.pattern.permute.xlu0 0
        %741 = vperm.xlu0 %740, %v721
        %v742 = vpop.permute.xlu0 %741
        %745 = vset.pattern.permute.xlu0 0
        %746 = vperm.xlu0 %745, %v722
        %v747 = vpop.permute.xlu0 %746
        %750 = vset.pattern.permute.xlu0 0
        %751 = vperm.xlu0 %750, %v723
        %v752 = vpop.permute.xlu0 %751
        %755 = vset.pattern.permute.xlu0 0
        %756 = vperm.xlu0 %755, %v724
        %v757 = vpop.permute.xlu0 %756
        %v759 = vmul.f32 %v735, %v742
        %v760 = vmul.f32 %v736, %v747
        %v761 = vmul.f32 %v737, %v752
        %v762 = vmul.f32 %v738, %v757
        %v763 = vadd.f32 %v731, %v759
        %v764 = vadd.f32 %v732, %v760
        %v765 = vadd.f32 %v733, %v761
        %v766 = vadd.f32 %v734, %v762
        %vm767 = vcmask 261120
        %768 = vst.msk [vmem:[#allocation2] sm:$0xff] %vm767, %v763
        %769 = vst.msk [vmem:[#allocation2 + $0x8] sm:$0xff] %vm767, %v764
        %770 = vst.msk [vmem:[#allocation2 + $0x10] sm:$0xff] %vm767, %v765
        %771 = vst.msk [vmem:[#allocation2 + $0x18] sm:$0xff] %vm767, %v766
      $region96: #{fftransformer_forward.1} parent=91 // pred_fallthru
        _
      %v772 = vld [vmem:[#allocation2] sm:$0xff]
      %v773 = vld [vmem:[#allocation2 + $0x8] sm:$0xff]
      %v774 = vld [vmem:[#allocation2 + $0x10] sm:$0xff]
      %v775 = vld [vmem:[#allocation2 + $0x18] sm:$0xff]
      %v776 = vld [vmem:[%s684] sm:$0xff]
      %v777 = vld [vmem:[%s684 + $0x8] sm:$0xff]
      %v778 = vld [vmem:[%s684 + $0x10] sm:$0xff]
      %v779 = vld [vmem:[%s684 + $0x18] sm:$0xff]
      %v780 = vld [vmem:[%s687] sm:$0x1]
      %v782 = vperm.slane %v780, 0
      %vm784 = vcmask 261120
      %v786 = vsel %vm784, %v772, 0
      %v789 = vsel %vm784, %v773, 0
      %v792 = vsel %vm784, %v774, 0
      %v795 = vsel %vm784, %v775, 0
      %797 = vmatpush.msra.mxu0 0.0
      %798 = vmatpush.msra.mxu0 0.0
      %799 = vmatpush.msra.mxu0 0.0
      %800 = vmatpush.msra.mxu0 0.0
      %801 = vmatpush.msra.mxu0 0.0
      %802 = vmatpush.msra.mxu0 0.0
      %803 = vmatpush.msra.mxu0 0.0
      %804 = vmatpush.msra.mxu0 0.0
      %805 = vmatpush.msra.mxu0 0.0
      %806 = vmatpush.msra.mxu0 0.0
      %807 = vmatpush.msra.mxu0 0.0
      %808 = vmatpush.msra.mxu0 0.0
      %809 = vmatpush.msra.mxu0 %v779
      %810 = vmatpush.msra.mxu0 %v778
      %811 = vmatpush.msra.mxu0 %v777
      %812 = vmatpush.msra.mxu0 %v776
      %813 = vmatmul.f32.gmra.mxu0 %v786
      %v814 = vpop.f32.mrf.mxu0
      %v815 = vadd.f32 %v782, %v814
      %816 = vmatmul.f32.gmra.mxu0 %v789
      %v817 = vpop.f32.mrf.mxu0
      %v818 = vadd.f32 %v782, %v817
      %819 = vmatmul.f32.gmra.mxu0 %v792
      %v820 = vpop.f32.mrf.mxu0
      %v821 = vadd.f32 %v782, %v820
      %822 = vmatmul.f32.gmra.mxu0 %v795
      %v823 = vpop.f32.mrf.mxu0
      %v824 = vadd.f32 %v782, %v823
      %825 = vdwg.mxu0
      %828 = vrot.lane.b32.xlu0 %v815, 96
      %v829 = vpop.permute.xlu0 %828
      %830 = vrot.lane.b32.xlu0 %v818, 96
      %v831 = vpop.permute.xlu0 %830
      %vm832 = vcmask 130048
      %v833 = vsel %vm832, %v815, 0
      %v835 = vsel %vm832, %v818, 0
      %v837 = vsel %vm832, %v829, 0
      %v839 = vsel %vm832, %v831, 0
      %841 = vmatpush.xpose.msra.mxu0 0.0
      %842 = vmatpush.xpose.msra.mxu0 0.0
      %843 = vmatpush.xpose.msra.mxu0 0.0
      %844 = vmatpush.xpose.msra.mxu0 0.0
      %845 = vmatpush.xpose.msra.mxu0 0.0
      %846 = vmatpush.xpose.msra.mxu0 0.0
      %847 = vmatpush.xpose.msra.mxu0 0.0
      %848 = vmatpush.xpose.msra.mxu0 0.0
      %849 = vmatpush.xpose.msra.mxu0 0.0
      %850 = vmatpush.xpose.msra.mxu0 0.0
      %851 = vmatpush.xpose.msra.mxu0 0.0
      %852 = vmatpush.xpose.msra.mxu0 0.0
      %853 = vmatpush.xpose.msra.mxu0 0.0
      %854 = vmatpush.xpose.msra.mxu0 0.0
      %855 = vmatpush.xpose.msra.mxu0 %v839
      %856 = vmatpush.xpose.msra.mxu0 %v837
      %857 = vmatmul.f32.gmra.mxu0 %v833
      %v858 = vpop.f32.mrf.mxu0
      %v859 = vadd.f32 0.0, %v858
      %860 = vmatmul.f32.gmra.mxu0 %v835
      %v861 = vpop.f32.mrf.mxu0
      %v862 = vadd.f32 0.0, %v861
      %863 = vdwg.mxu0
      %866 = vrot.lane.b32.xlu0 %v821, 96
      %v867 = vpop.permute.xlu0 %866
      %868 = vrot.lane.b32.xlu0 %v824, 96
      %v869 = vpop.permute.xlu0 %868
      %v870 = vsel %vm832, %v821, 0
      %v872 = vsel %vm832, %v824, 0
      %v874 = vsel %vm832, %v867, 0
      %v876 = vsel %vm832, %v869, 0
      %878 = vmatpush.xpose.msra.mxu0 0.0
      %879 = vmatpush.xpose.msra.mxu0 0.0
      %880 = vmatpush.xpose.msra.mxu0 0.0
      %881 = vmatpush.xpose.msra.mxu0 0.0
      %882 = vmatpush.xpose.msra.mxu0 0.0
      %883 = vmatpush.xpose.msra.mxu0 0.0
      %884 = vmatpush.xpose.msra.mxu0 0.0
      %885 = vmatpush.xpose.msra.mxu0 0.0
      %886 = vmatpush.xpose.msra.mxu0 0.0
      %887 = vmatpush.xpose.msra.mxu0 0.0
      %888 = vmatpush.xpose.msra.mxu0 0.0
      %889 = vmatpush.xpose.msra.mxu0 0.0
      %890 = vmatpush.xpose.msra.mxu0 0.0
      %891 = vmatpush.xpose.msra.mxu0 0.0
      %892 = vmatpush.xpose.msra.mxu0 %v876
      %893 = vmatpush.xpose.msra.mxu0 %v874
      %894 = vmatmul.f32.gmra.mxu0 %v870
      %v895 = vpop.f32.mrf.mxu0
      %v896 = vadd.f32 0.0, %v895
      %897 = vmatmul.f32.gmra.mxu0 %v872
      %v898 = vpop.f32.mrf.mxu0
      %v899 = vadd.f32 0.0, %v898
      %900 = vdwg.mxu0
      %v901 = vmul.f32 %v859, 0.25
      %v902 = vmul.f32 %v862, 0.25
      %v903 = vmul.f32 %v896, 0.25
      %v904 = vmul.f32 %v899, 0.25
      %vm905 = vcmp.gt.f32.partialorder %v725, 0.5
      %vm906 = vcmp.gt.f32.partialorder %v726, 0.5
      %v907 = vsel %vm905, 1, 0
      %v908 = vsel %vm906, 1, 0
      %v909 = vperm.slane %v907, 0
      %v910 = vperm.slane %v908, 0
      %vm911 = vcmp.eq.s32.totalorder %v909, 1
      %vm912 = vcmp.eq.s32.totalorder %v910, 1
      %v913 = vsel %vm911, %v901, -1e+30
      %v914 = vsel %vm911, %v902, -1e+30
      %v915 = vsel %vm912, %v903, -1e+30
      %v916 = vsel %vm912, %v904, -1e+30
      %v917 = vsel %vm832, %v913, -inf
      %918 = vmax.xlane.f32.xlu0 %v917
      %v919 = vpop.xlane.xlu0 %918
      %v920 = vsel %vm832, %v914, -inf
      %921 = vmax.xlane.f32.xlu0 %v920
      %v922 = vpop.xlane.xlu0 %921
      %v923 = vsel %vm832, %v915, -inf
      %924 = vmax.xlane.f32.xlu0 %v923
      %v925 = vpop.xlane.xlu0 %924
      %v926 = vsel %vm832, %v916, -inf
      %927 = vmax.xlane.f32.xlu0 %v926
      %v928 = vpop.xlane.xlu0 %927
      %v929 = vsub.f32 %v913, %v919
      %v930 = vsub.f32 %v914, %v922
      %v931 = vsub.f32 %v915, %v925
      %v932 = vsub.f32 %v916, %v928
      %v933 = vmul.f32 %v929, 1.442695
      %v934 = vpow.pop %v933
      %v935 = vmul.f32 %v930, 1.442695
      %v936 = vpow.pop %v935
      %v937 = vmul.f32 %v931, 1.442695
      %v938 = vpow.pop %v937
      %v939 = vmul.f32 %v932, 1.442695
      %v940 = vpow.pop %v939
      %v941 = vsel %vm832, %v934, 0.0
      %942 = vadd.xlane.f32.xlu0 %v941
      %v943 = vpop.xlane.xlu0 %942
      %v944 = vsel %vm832, %v936, 0.0
      %945 = vadd.xlane.f32.xlu0 %v944
      %v946 = vpop.xlane.xlu0 %945
      %v947 = vsel %vm832, %v938, 0.0
      %948 = vadd.xlane.f32.xlu0 %v947
      %v949 = vpop.xlane.xlu0 %948
      %v950 = vsel %vm832, %v940, 0.0
      %951 = vadd.xlane.f32.xlu0 %v950
      %v952 = vpop.xlane.xlu0 %951
      %v953 = vrcp.pop %v943
      %v954 = vrcp.pop %v946
      %v955 = vrcp.pop %v949
      %v956 = vrcp.pop %v952
      %v957 = vmul.f32 %v934, %v953
      %v958 = vmul.f32 %v936, %v954
      %v959 = vmul.f32 %v938, %v955
      %v960 = vmul.f32 %v940, %v956
      %961 = vrot.lane.b32.xlu0 %v815, 64
      %v962 = vpop.permute.xlu0 %961
      %963 = vrot.lane.b32.xlu0 %v818, 64
      %v964 = vpop.permute.xlu0 %963
      %v968 = vsel %vm832, %v957, 0
      %v971 = vsel %vm832, %v958, 0
      %973 = vmatpush.msra.mxu0 0.0
      %974 = vmatpush.msra.mxu0 0.0
      %975 = vmatpush.msra.mxu0 0.0
      %976 = vmatpush.msra.mxu0 0.0
      %977 = vmatpush.msra.mxu0 0.0
      %978 = vmatpush.msra.mxu0 0.0
      %979 = vmatpush.msra.mxu0 0.0
      %980 = vmatpush.msra.mxu0 0.0
      %981 = vmatpush.msra.mxu0 0.0
      %982 = vmatpush.msra.mxu0 0.0
      %983 = vmatpush.msra.mxu0 0.0
      %984 = vmatpush.msra.mxu0 0.0
      %985 = vmatpush.msra.mxu0 0.0
      %986 = vmatpush.msra.mxu0 0.0
      %987 = vmatpush.msra.mxu0 %v964
      %988 = vmatpush.msra.mxu0 %v962
      %989 = vmatmul.f32.gmra.mxu0 %v968
      %v990 = vpop.f32.mrf.mxu0
      %v991 = vadd.f32 0.0, %v990
      %992 = vmatmul.f32.gmra.mxu0 %v971
      %v993 = vpop.f32.mrf.mxu0
      %v994 = vadd.f32 0.0, %v993
      %995 = vdwg.mxu0
      %996 = vrot.lane.b32.xlu0 %v821, 64
      %v997 = vpop.permute.xlu0 %996
      %998 = vrot.lane.b32.xlu0 %v824, 64
      %v999 = vpop.permute.xlu0 %998
      %v1003 = vsel %vm832, %v959, 0
      %v1006 = vsel %vm832, %v960, 0
      %1008 = vmatpush.msra.mxu0 0.0
      %1009 = vmatpush.msra.mxu0 0.0
      %1010 = vmatpush.msra.mxu0 0.0
      %1011 = vmatpush.msra.mxu0 0.0
      %1012 = vmatpush.msra.mxu0 0.0
      %1013 = vmatpush.msra.mxu0 0.0
      %1014 = vmatpush.msra.mxu0 0.0
      %1015 = vmatpush.msra.mxu0 0.0
      %1016 = vmatpush.msra.mxu0 0.0
      %1017 = vmatpush.msra.mxu0 0.0
      %1018 = vmatpush.msra.mxu0 0.0
      %1019 = vmatpush.msra.mxu0 0.0
      %1020 = vmatpush.msra.mxu0 0.0
      %1021 = vmatpush.msra.mxu0 0.0
      %1022 = vmatpush.msra.mxu0 %v999
      %1023 = vmatpush.msra.mxu0 %v997
      %1024 = vmatmul.f32.gmra.mxu0 %v1003
      %v1025 = vpop.f32.mrf.mxu0
      %v1026 = vadd.f32 0.0, %v1025
      %1027 = vmatmul.f32.gmra.mxu0 %v1006
      %v1028 = vpop.f32.mrf.mxu0
      %v1029 = vadd.f32 0.0, %v1028
      %1030 = vdwg.mxu0
      %1031 = vrot.lane.b32.xlu0 %v815, 112
      %v1032 = vpop.permute.xlu0 %1031
      %1033 = vrot.lane.b32.xlu0 %v818, 112
      %v1034 = vpop.permute.xlu0 %1033
      %1035 = vrot.lane.b32.xlu0 %v815, 80
      %v1036 = vpop.permute.xlu0 %1035
      %1037 = vrot.lane.b32.xlu0 %v818, 80
      %v1038 = vpop.permute.xlu0 %1037
      %v1039 = vsel %vm832, %v1032, 0
      %v1041 = vsel %vm832, %v1034, 0
      %v1043 = vsel %vm832, %v1036, 0
      %v1045 = vsel %vm832, %v1038, 0
      %1047 = vmatpush.xpose.msra.mxu0 0.0
      %1048 = vmatpush.xpose.msra.mxu0 0.0
      %1049 = vmatpush.xpose.msra.mxu0 0.0
      %1050 = vmatpush.xpose.msra.mxu0 0.0
      %1051 = vmatpush.xpose.msra.mxu0 0.0
      %1052 = vmatpush.xpose.msra.mxu0 0.0
      %1053 = vmatpush.xpose.msra.mxu0 0.0
      %1054 = vmatpush.xpose.msra.mxu0 0.0
      %1055 = vmatpush.xpose.msra.mxu0 0.0
      %1056 = vmatpush.xpose.msra.mxu0 0.0
      %1057 = vmatpush.xpose.msra.mxu0 0.0
      %1058 = vmatpush.xpose.msra.mxu0 0.0
      %1059 = vmatpush.xpose.msra.mxu0 0.0
      %1060 = vmatpush.xpose.msra.mxu0 0.0
      %1061 = vmatpush.xpose.msra.mxu0 %v1045
      %1062 = vmatpush.xpose.msra.mxu0 %v1043
      %1063 = vmatmul.f32.gmra.mxu0 %v1039
      %v1064 = vpop.f32.mrf.mxu0
      %v1065 = vadd.f32 0.0, %v1064
      %1066 = vmatmul.f32.gmra.mxu0 %v1041
      %v1067 = vpop.f32.mrf.mxu0
      %v1068 = vadd.f32 0.0, %v1067
      %1069 = vdwg.mxu0
      %1070 = vrot.lane.b32.xlu0 %v821, 112
      %v1071 = vpop.permute.xlu0 %1070
      %1072 = vrot.lane.b32.xlu0 %v824, 112
      %v1073 = vpop.permute.xlu0 %1072
      %1074 = vrot.lane.b32.xlu0 %v821, 80
      %v1075 = vpop.permute.xlu0 %1074
      %1076 = vrot.lane.b32.xlu0 %v824, 80
      %v1077 = vpop.permute.xlu0 %1076
      %v1078 = vsel %vm832, %v1071, 0
      %v1080 = vsel %vm832, %v1073, 0
      %v1082 = vsel %vm832, %v1075, 0
      %v1084 = vsel %vm832, %v1077, 0
      %1086 = vmatpush.xpose.msra.mxu0 0.0
      %1087 = vmatpush.xpose.msra.mxu0 0.0
      %1088 = vmatpush.xpose.msra.mxu0 0.0
      %1089 = vmatpush.xpose.msra.mxu0 0.0
      %1090 = vmatpush.xpose.msra.mxu0 0.0
      %1091 = vmatpush.xpose.msra.mxu0 0.0
      %1092 = vmatpush.xpose.msra.mxu0 0.0
      %1093 = vmatpush.xpose.msra.mxu0 0.0
      %1094 = vmatpush.xpose.msra.mxu0 0.0
      %1095 = vmatpush.xpose.msra.mxu0 0.0
      %1096 = vmatpush.xpose.msra.mxu0 0.0
      %1097 = vmatpush.xpose.msra.mxu0 0.0
      %1098 = vmatpush.xpose.msra.mxu0 0.0
      %1099 = vmatpush.xpose.msra.mxu0 0.0
      %1100 = vmatpush.xpose.msra.mxu0 %v1084
      %1101 = vmatpush.xpose.msra.mxu0 %v1082
      %1102 = vmatmul.f32.gmra.mxu0 %v1078
      %v1103 = vpop.f32.mrf.mxu0
      %v1104 = vadd.f32 0.0, %v1103
      %1105 = vmatmul.f32.gmra.mxu0 %v1080
      %v1106 = vpop.f32.mrf.mxu0
      %v1107 = vadd.f32 0.0, %v1106
      %1108 = vdwg.mxu0
      %v1109 = vmul.f32 %v1065, 0.25
      %v1110 = vmul.f32 %v1068, 0.25
      %v1111 = vmul.f32 %v1104, 0.25
      %v1112 = vmul.f32 %v1107, 0.25
      %v1113 = vsel %vm911, %v1109, -1e+30
      %v1114 = vsel %vm911, %v1110, -1e+30
      %v1115 = vsel %vm912, %v1111, -1e+30
      %v1116 = vsel %vm912, %v1112, -1e+30
      %v1117 = vsel %vm832, %v1113, -inf
      %1118 = vmax.xlane.f32.xlu0 %v1117
      %v1119 = vpop.xlane.xlu0 %1118
      %v1120 = vsel %vm832, %v1114, -inf
      %1121 = vmax.xlane.f32.xlu0 %v1120
      %v1122 = vpop.xlane.xlu0 %1121
      %v1123 = vsel %vm832, %v1115, -inf
      %1124 = vmax.xlane.f32.xlu0 %v1123
      %v1125 = vpop.xlane.xlu0 %1124
      %v1126 = vsel %vm832, %v1116, -inf
      %1127 = vmax.xlane.f32.xlu0 %v1126
      %v1128 = vpop.xlane.xlu0 %1127
      %v1129 = vsub.f32 %v1113, %v1119
      %v1130 = vsub.f32 %v1114, %v1122
      %v1131 = vsub.f32 %v1115, %v1125
      %v1132 = vsub.f32 %v1116, %v1128
      %v1133 = vmul.f32 %v1129, 1.442695
      %v1134 = vpow.pop %v1133
      %v1135 = vmul.f32 %v1130, 1.442695
      %v1136 = vpow.pop %v1135
      %v1137 = vmul.f32 %v1131, 1.442695
      %v1138 = vpow.pop %v1137
      %v1139 = vmul.f32 %v1132, 1.442695
      %v1140 = vpow.pop %v1139
      %v1141 = vsel %vm832, %v1134, 0.0
      %1142 = vadd.xlane.f32.xlu0 %v1141
      %v1143 = vpop.xlane.xlu0 %1142
      %v1144 = vsel %vm832, %v1136, 0.0
      %1145 = vadd.xlane.f32.xlu0 %v1144
      %v1146 = vpop.xlane.xlu0 %1145
      %v1147 = vsel %vm832, %v1138, 0.0
      %1148 = vadd.xlane.f32.xlu0 %v1147
      %v1149 = vpop.xlane.xlu0 %1148
      %v1150 = vsel %vm832, %v1140, 0.0
      %1151 = vadd.xlane.f32.xlu0 %v1150
      %v1152 = vpop.xlane.xlu0 %1151
      %v1153 = vrcp.pop %v1143
      %v1154 = vrcp.pop %v1146
      %v1155 = vrcp.pop %v1149
      %v1156 = vrcp.pop %v1152
      %v1157 = vmul.f32 %v1134, %v1153
      %v1158 = vmul.f32 %v1136, %v1154
      %v1159 = vmul.f32 %v1138, %v1155
      %v1160 = vmul.f32 %v1140, %v1156
      %1161 = vrot.lane.b32.xlu0 %v815, 48
      %v1162 = vpop.permute.xlu0 %1161
      %1163 = vrot.lane.b32.xlu0 %v818, 48
      %v1164 = vpop.permute.xlu0 %1163
      %v1168 = vsel %vm832, %v1157, 0
      %v1171 = vsel %vm832, %v1158, 0
      %1173 = vmatpush.msra.mxu0 0.0
      %1174 = vmatpush.msra.mxu0 0.0
      %1175 = vmatpush.msra.mxu0 0.0
      %1176 = vmatpush.msra.mxu0 0.0
      %1177 = vmatpush.msra.mxu0 0.0
      %1178 = vmatpush.msra.mxu0 0.0
      %1179 = vmatpush.msra.mxu0 0.0
      %1180 = vmatpush.msra.mxu0 0.0
      %1181 = vmatpush.msra.mxu0 0.0
      %1182 = vmatpush.msra.mxu0 0.0
      %1183 = vmatpush.msra.mxu0 0.0
      %1184 = vmatpush.msra.mxu0 0.0
      %1185 = vmatpush.msra.mxu0 0.0
      %1186 = vmatpush.msra.mxu0 0.0
      %1187 = vmatpush.msra.mxu0 %v1164
      %1188 = vmatpush.msra.mxu0 %v1162
      %1189 = vmatmul.f32.gmra.mxu0 %v1168
      %v1190 = vpop.f32.mrf.mxu0
      %v1191 = vadd.f32 0.0, %v1190
      %1192 = vmatmul.f32.gmra.mxu0 %v1171
      %v1193 = vpop.f32.mrf.mxu0
      %v1194 = vadd.f32 0.0, %v1193
      %1195 = vdwg.mxu0
      %1196 = vrot.lane.b32.xlu0 %v821, 48
      %v1197 = vpop.permute.xlu0 %1196
      %1198 = vrot.lane.b32.xlu0 %v824, 48
      %v1199 = vpop.permute.xlu0 %1198
      %v1203 = vsel %vm832, %v1159, 0
      %v1206 = vsel %vm832, %v1160, 0
      %1208 = vmatpush.msra.mxu0 0.0
      %1209 = vmatpush.msra.mxu0 0.0
      %1210 = vmatpush.msra.mxu0 0.0
      %1211 = vmatpush.msra.mxu0 0.0
      %1212 = vmatpush.msra.mxu0 0.0
      %1213 = vmatpush.msra.mxu0 0.0
      %1214 = vmatpush.msra.mxu0 0.0
      %1215 = vmatpush.msra.mxu0 0.0
      %1216 = vmatpush.msra.mxu0 0.0
      %1217 = vmatpush.msra.mxu0 0.0
      %1218 = vmatpush.msra.mxu0 0.0
      %1219 = vmatpush.msra.mxu0 0.0
      %1220 = vmatpush.msra.mxu0 0.0
      %1221 = vmatpush.msra.mxu0 0.0
      %1222 = vmatpush.msra.mxu0 %v1199
      %1223 = vmatpush.msra.mxu0 %v1197
      %1224 = vmatmul.f32.gmra.mxu0 %v1203
      %v1225 = vpop.f32.mrf.mxu0
      %v1226 = vadd.f32 0.0, %v1225
      %1227 = vmatmul.f32.gmra.mxu0 %v1206
      %v1228 = vpop.f32.mrf.mxu0
      %v1229 = vadd.f32 0.0, %v1228
      %1230 = vdwg.mxu0
      %1235 = vrot.lane.b32.xlu0 %v1191, 16
      %v1236 = vpop.permute.xlu0 %1235
      %1237 = vrot.lane.b32.xlu0 %v1194, 16
      %v1238 = vpop.permute.xlu0 %1237
      %1239 = vrot.lane.b32.xlu0 %v1226, 16
      %v1240 = vpop.permute.xlu0 %1239
      %1241 = vrot.lane.b32.xlu0 %v1229, 16
      %v1242 = vpop.permute.xlu0 %1241
      %v1247 = vsel %vm832, %v991, %v1236
      %v1248 = vsel %vm832, %v994, %v1238
      %v1249 = vsel %vm832, %v1026, %v1240
      %v1250 = vsel %vm832, %v1029, %v1242
      %v1251 = vld [vmem:[%s692] sm:$0xff]
      %v1252 = vld [vmem:[%s692 + $0x8] sm:$0xff]
      %v1253 = vld [vmem:[%s692 + $0x10] sm:$0xff]
      %v1254 = vld [vmem:[%s692 + $0x18] sm:$0xff]
      %v1256 = vsel %vm784, %v1247, 0
      %v1259 = vsel %vm784, %v1248, 0
      %v1262 = vsel %vm784, %v1249, 0
      %v1265 = vsel %vm784, %v1250, 0
      %1267 = vmatpush.msra.mxu0 0.0
      %1268 = vmatpush.msra.mxu0 0.0
      %1269 = vmatpush.msra.mxu0 0.0
      %1270 = vmatpush.msra.mxu0 0.0
      %1271 = vmatpush.msra.mxu0 0.0
      %1272 = vmatpush.msra.mxu0 0.0
      %1273 = vmatpush.msra.mxu0 0.0
      %1274 = vmatpush.msra.mxu0 0.0
      %1275 = vmatpush.msra.mxu0 0.0
      %1276 = vmatpush.msra.mxu0 0.0
      %1277 = vmatpush.msra.mxu0 0.0
      %1278 = vmatpush.msra.mxu0 0.0
      %1279 = vmatpush.msra.mxu0 %v1254
      %1280 = vmatpush.msra.mxu0 %v1253
      %1281 = vmatpush.msra.mxu0 %v1252
      %1282 = vmatpush.msra.mxu0 %v1251
      %1283 = vmatmul.f32.gmra.mxu0 %v1256
      %v1284 = vpop.f32.mrf.mxu0
      %v1285 = vadd.f32 0.0, %v1284
      %1286 = vmatmul.f32.gmra.mxu0 %v1259
      %v1287 = vpop.f32.mrf.mxu0
      %v1288 = vadd.f32 0.0, %v1287
      %1289 = vmatmul.f32.gmra.mxu0 %v1262
      %v1290 = vpop.f32.mrf.mxu0
      %v1291 = vadd.f32 0.0, %v1290
      %1292 = vmatmul.f32.gmra.mxu0 %v1265
      %v1293 = vpop.f32.mrf.mxu0
      %v1294 = vadd.f32 0.0, %v1293
      %1295 = vdwg.mxu0
      %v1296 = vadd.f32 %v772, %v1285
      %v1297 = vadd.f32 %v773, %v1288
      %v1298 = vadd.f32 %v774, %v1291
      %v1299 = vadd.f32 %v775, %v1294
      %v1300 = vld [vmem:[%s695] sm:$0x1]
      %v1301 = vld [vmem:[%s698] sm:$0x1]
      %v1302 = vsel %vm784, %v1296, 0.0
      %1303 = vadd.xlane.f32.xlu0 %v1302
      %v1304 = vpop.xlane.xlu0 %1303
      %v1305 = vsel %vm784, %v1297, 0.0
      %1306 = vadd.xlane.f32.xlu0 %v1305
      %v1307 = vpop.xlane.xlu0 %1306
      %v1308 = vsel %vm784, %v1298, 0.0
      %1309 = vadd.xlane.f32.xlu0 %v1308
      %v1310 = vpop.xlane.xlu0 %1309
      %v1311 = vsel %vm784, %v1299, 0.0
      %1312 = vadd.xlane.f32.xlu0 %v1311
      %v1313 = vpop.xlane.xlu0 %1312
      %v1314 = vrcp.pop 32.0
      %v1315 = vmul.f32 32.0, %v1314
      %v1316 = vsub.f32 1.0, %v1315
      %v1317 = vmul.f32 %v1314, %v1316
      %v1318 = vadd.f32 %v1314, %v1317
      %vm1319 = vweird.f32 %v1314
      %v1320 = vsel %vm1319, %v1314, %v1318
      %v1321 = vmul.f32 %v1304, %v1320
      %v1322 = vmul.f32 %v1307, %v1320
      %v1323 = vmul.f32 %v1310, %v1320
      %v1324 = vmul.f32 %v1313, %v1320
      %v1325 = vsub.f32 %v1296, %v1321
      %v1326 = vsub.f32 %v1297, %v1322
      %v1327 = vsub.f32 %v1298, %v1323
      %v1328 = vsub.f32 %v1299, %v1324
      %v1329 = vmul.f32 %v1325, %v1325
      %v1330 = vmul.f32 %v1326, %v1326
      %v1331 = vmul.f32 %v1327, %v1327
      %v1332 = vmul.f32 %v1328, %v1328
      %v1333 = vsel %vm784, %v1329, 0.0
      %1334 = vadd.xlane.f32.xlu0 %v1333
      %v1335 = vpop.xlane.xlu0 %1334
      %v1336 = vsel %vm784, %v1330, 0.0
      %1337 = vadd.xlane.f32.xlu0 %v1336
      %v1338 = vpop.xlane.xlu0 %1337
      %v1339 = vsel %vm784, %v1331, 0.0
      %1340 = vadd.xlane.f32.xlu0 %v1339
      %v1341 = vpop.xlane.xlu0 %1340
      %v1342 = vsel %vm784, %v1332, 0.0
      %1343 = vadd.xlane.f32.xlu0 %v1342
      %v1344 = vpop.xlane.xlu0 %1343
      %v1345 = vmul.f32 %v1335, %v1320
      %v1346 = vmul.f32 %v1338, %v1320
      %v1347 = vmul.f32 %v1341, %v1320
      %v1348 = vmul.f32 %v1344, %v1320
      %v1349 = vadd.f32 %v1345, 1e-05
      %v1350 = vadd.f32 %v1346, 1e-05
      %v1351 = vadd.f32 %v1347, 1e-05
      %v1352 = vadd.f32 %v1348, 1e-05
      %v1353 = vrsqrt.pop %v1349
      %v1354 = vmul.f32 %v1353, %v1349
      %v1355 = vmul.f32 %v1354, %v1353
      %v1356 = vmul.f32 0.5, %v1355
      %v1357 = vsub.f32 1.5, %v1356
      %v1358 = vmul.f32 %v1353, %v1357
      %vm1359 = vweird.f32 %v1349
      %vm1360 = vweird.f32 %v1353
      %vm1361 = vmor %vm1359, %vm1360
      %v1362 = vsel %vm1361, %v1353, %v1358
      %v1363 = vrsqrt.pop %v1350
      %v1364 = vmul.f32 %v1363, %v1350
      %v1365 = vmul.f32 %v1364, %v1363
      %v1366 = vmul.f32 0.5, %v1365
      %v1367 = vsub.f32 1.5, %v1366
      %v1368 = vmul.f32 %v1363, %v1367
      %vm1369 = vweird.f32 %v1350
      %vm1370 = vweird.f32 %v1363
      %vm1371 = vmor %vm1369, %vm1370
      %v1372 = vsel %vm1371, %v1363, %v1368
      %v1373 = vrsqrt.pop %v1351
      %v1374 = vmul.f32 %v1373, %v1351
      %v1375 = vmul.f32 %v1374, %v1373
      %v1376 = vmul.f32 0.5, %v1375
      %v1377 = vsub.f32 1.5, %v1376
      %v1378 = vmul.f32 %v1373, %v1377
      %vm1379 = vweird.f32 %v1351
      %vm1380 = vweird.f32 %v1373
      %vm1381 = vmor %vm1379, %vm1380
      %v1382 = vsel %vm1381, %v1373, %v1378
      %v1383 = vrsqrt.pop %v1352
      %v1384 = vmul.f32 %v1383, %v1352
      %v1385 = vmul.f32 %v1384, %v1383
      %v1386 = vmul.f32 0.5, %v1385
      %v1387 = vsub.f32 1.5, %v1386
      %v1388 = vmul.f32 %v1383, %v1387
      %vm1389 = vweird.f32 %v1352
      %vm1390 = vweird.f32 %v1383
      %vm1391 = vmor %vm1389, %vm1390
      %v1392 = vsel %vm1391, %v1383, %v1388
      %v1393 = vmul.f32 %v1325, %v1362
      %v1394 = vmul.f32 %v1326, %v1372
      %v1395 = vmul.f32 %v1327, %v1382
      %v1396 = vmul.f32 %v1328, %v1392
      %v1398 = vperm.slane %v1300, 0
      %v1400 = vmul.f32 %v1393, %v1398
      %v1401 = vmul.f32 %v1394, %v1398
      %v1402 = vmul.f32 %v1395, %v1398
      %v1403 = vmul.f32 %v1396, %v1398
      %v1405 = vperm.slane %v1301, 0
      %v1407 = vadd.f32 %v1400, %v1405
      %v1408 = vadd.f32 %v1401, %v1405
      %v1409 = vadd.f32 %v1402, %v1405
      %v1410 = vadd.f32 %v1403, %v1405
      %1412 = vset.pattern.permute.xlu0 0
      %1413 = vperm.xlu0 %1412, %v721
      %v1414 = vpop.permute.xlu0 %1413
      %1417 = vset.pattern.permute.xlu0 0
      %1418 = vperm.xlu0 %1417, %v722
      %v1419 = vpop.permute.xlu0 %1418
      %1422 = vset.pattern.permute.xlu0 0
      %1423 = vperm.xlu0 %1422, %v723
      %v1424 = vpop.permute.xlu0 %1423
      %1427 = vset.pattern.permute.xlu0 0
      %1428 = vperm.xlu0 %1427, %v724
      %v1429 = vpop.permute.xlu0 %1428
      %v1431 = vmul.f32 %v1407, %v1414
      %v1432 = vmul.f32 %v1408, %v1419
      %v1433 = vmul.f32 %v1409, %v1424
      %v1434 = vmul.f32 %v1410, %v1429
      %v1435 = vld [vmem:[%s4] sm:$0xff]
      %v1436 = vld [vmem:[%s4 + $0x8] sm:$0xff]
      %v1437 = vld [vmem:[%s4 + $0x10] sm:$0xff]
      %v1438 = vld [vmem:[%s4 + $0x18] sm:$0xff]
      %s1439 = scalar_lea.vmem %s703, 32
      %v1440 = vld [vmem:[%s1439] sm:$0xff]
      %v1441 = vld [vmem:[%s1439 + $0x8] sm:$0xff]
      %v1442 = vld [vmem:[%s1439 + $0x10] sm:$0xff]
      %v1443 = vld [vmem:[%s1439 + $0x18] sm:$0xff]
      %v1444 = vrot.slane %v1431, 7
      %v1445 = vrot.slane %v1432, 7
      %v1446 = vrot.slane %v1433, 7
      %v1447 = vrot.slane %v1434, 7
      %v1448 = vlaneseq
      %v1449 = vshrl.u32 %v1448, 7
      %vm1450 = vcmp.lt.s32.totalorder %v1449, 1
      %v1451 = vsel %vm1450, %v1446, %v1447
      %v1452 = vsel %vm1450, %v1445, %v1446
      %v1453 = vsel %vm1450, %v1444, %v1445
      %v1454 = vsel %vm1450, %v1447, %v1444
      %v1455 = vadd.f32 %v1435, -1.0
      %v1456 = vadd.f32 %v1436, -1.0
      %v1457 = vadd.f32 %v1437, -1.0
      %v1458 = vadd.f32 %v1438, -1.0
      %vm1459 = vcmp.ge.f32.partialorder %v1455, 0.0
      %vm1460 = vcmp.ge.f32.partialorder %v1456, 0.0
      %vm1461 = vcmp.ge.f32.partialorder %v1457, 0.0
      %vm1462 = vcmp.ge.f32.partialorder %v1458, 0.0
      %vm1463 = vcmp.lt.f32.partialorder %v1455, 16.0
      %vm1464 = vcmp.lt.f32.partialorder %v1456, 16.0
      %vm1465 = vcmp.lt.f32.partialorder %v1457, 16.0
      %vm1466 = vcmp.lt.f32.partialorder %v1458, 16.0
      %vm1467 = vmand %vm1459, %vm1463
      %vm1468 = vmand %vm1460, %vm1464
      %vm1469 = vmand %vm1461, %vm1465
      %vm1470 = vmand %vm1462, %vm1466
      %v1471 = vsel %vm1467, 1, 0
      %v1472 = vsel %vm1468, 1, 0
      %v1473 = vsel %vm1469, 1, 0
      %v1474 = vsel %vm1470, 1, 0
      %1475 = vset.pattern.permute.xlu0 0
      %1476 = vperm.xlu0 %1475, %v1471
      %v1477 = vpop.permute.xlu0 %1476
      %1478 = vset.pattern.permute.xlu0 0
      %1479 = vperm.xlu0 %1478, %v1472
      %v1480 = vpop.permute.xlu0 %1479
      %1481 = vset.pattern.permute.xlu0 0
      %1482 = vperm.xlu0 %1481, %v1473
      %v1483 = vpop.permute.xlu0 %1482
      %1484 = vset.pattern.permute.xlu0 0
      %1485 = vperm.xlu0 %1484, %v1474
      %v1486 = vpop.permute.xlu0 %1485
      %vm1487 = vcmp.eq.s32.totalorder %v1477, 1
      %vm1488 = vcmp.eq.s32.totalorder %v1480, 1
      %vm1489 = vcmp.eq.s32.totalorder %v1483, 1
      %vm1490 = vcmp.eq.s32.totalorder %v1486, 1
      %v1491 = vsel %vm1487, %v1454, 0.0
      %v1492 = vsel %vm1488, %v1453, 0.0
      %v1493 = vsel %vm1489, %v1452, 0.0
      %v1494 = vsel %vm1490, %v1451, 0.0
      %v1495 = vld [vmem:[%s703] sm:$0xff]
      %v1496 = vld [vmem:[%s703 + $0x8] sm:$0xff]
      %v1497 = vld [vmem:[%s703 + $0x10] sm:$0xff]
      %v1498 = vld [vmem:[%s703 + $0x18] sm:$0xff]
      %v1500 = vsel %vm784, %v1491, 0
      %v1503 = vsel %vm784, %v1492, 0
      %v1506 = vsel %vm784, %v1493, 0
      %v1509 = vsel %vm784, %v1494, 0
      %1511 = vmatpush.msra.mxu0 0.0
      %1512 = vmatpush.msra.mxu0 0.0
      %1513 = vmatpush.msra.mxu0 0.0
      %1514 = vmatpush.msra.mxu0 0.0
      %1515 = vmatpush.msra.mxu0 0.0
      %1516 = vmatpush.msra.mxu0 0.0
      %1517 = vmatpush.msra.mxu0 0.0
      %1518 = vmatpush.msra.mxu0 0.0
      %1519 = vmatpush.msra.mxu0 0.0
      %1520 = vmatpush.msra.mxu0 0.0
      %1521 = vmatpush.msra.mxu0 0.0
      %1522 = vmatpush.msra.mxu0 0.0
      %1523 = vmatpush.msra.mxu0 %v1498
      %1524 = vmatpush.msra.mxu0 %v1497
      %1525 = vmatpush.msra.mxu0 %v1496
      %1526 = vmatpush.msra.mxu0 %v1495
      %1527 = vmatmul.f32.gmra.mxu0 %v1500
      %v1528 = vpop.f32.mrf.mxu0
      %v1529 = vadd.f32 0.0, %v1528
      %1530 = vmatmul.f32.gmra.mxu0 %v1503
      %v1531 = vpop.f32.mrf.mxu0
      %v1532 = vadd.f32 0.0, %v1531
      %1533 = vmatmul.f32.gmra.mxu0 %v1506
      %v1534 = vpop.f32.mrf.mxu0
      %v1535 = vadd.f32 0.0, %v1534
      %1536 = vmatmul.f32.gmra.mxu0 %v1509
      %v1537 = vpop.f32.mrf.mxu0
      %v1538 = vadd.f32 0.0, %v1537
      %1539 = vdwg.mxu0
      %v1541 = vsel %vm784, %v1431, 0
      %v1544 = vsel %vm784, %v1432, 0
      %v1547 = vsel %vm784, %v1433, 0
      %v1550 = vsel %vm784, %v1434, 0
      %1552 = vmatpush.msra.mxu0 0.0
      %1553 = vmatpush.msra.mxu0 0.0
      %1554 = vmatpush.msra.mxu0 0.0
      %1555 = vmatpush.msra.mxu0 0.0
      %1556 = vmatpush.msra.mxu0 0.0
      %1557 = vmatpush.msra.mxu0 0.0
      %1558 = vmatpush.msra.mxu0 0.0
      %1559 = vmatpush.msra.mxu0 0.0
      %1560 = vmatpush.msra.mxu0 0.0
      %1561 = vmatpush.msra.mxu0 0.0
      %1562 = vmatpush.msra.mxu0 0.0
      %1563 = vmatpush.msra.mxu0 0.0
      %1564 = vmatpush.msra.mxu0 %v1443
      %1565 = vmatpush.msra.mxu0 %v1442
      %1566 = vmatpush.msra.mxu0 %v1441
      %1567 = vmatpush.msra.mxu0 %v1440
      %1568 = vmatmul.f32.gmra.mxu0 %v1541
      %v1569 = vpop.f32.mrf.mxu0
      %v1570 = vadd.f32 %v1529, %v1569
      %1571 = vmatmul.f32.gmra.mxu0 %v1544
      %v1572 = vpop.f32.mrf.mxu0
      %v1573 = vadd.f32 %v1532, %v1572
      %1574 = vmatmul.f32.gmra.mxu0 %v1547
      %v1575 = vpop.f32.mrf.mxu0
      %v1576 = vadd.f32 %v1535, %v1575
      %1577 = vmatmul.f32.gmra.mxu0 %v1550
      %v1578 = vpop.f32.mrf.mxu0
      %v1579 = vadd.f32 %v1538, %v1578
      %1580 = vdwg.mxu0
      %v1581 = vrot.slane %v1431, 1
      %v1582 = vrot.slane %v1432, 1
      %v1583 = vrot.slane %v1433, 1
      %v1584 = vrot.slane %v1434, 1
      %vm1585 = vcmp.lt.s32.totalorder %v1449, 7
      %v1586 = vsel %vm1585, %v1583, %v1584
      %v1587 = vsel %vm1585, %v1582, %v1583
      %v1588 = vsel %vm1585, %v1581, %v1582
      %v1589 = vsel %vm1585, %v1584, %v1581
      %v1590 = vadd.f32 %v1435, 1.0
      %v1591 = vadd.f32 %v1436, 1.0
      %v1592 = vadd.f32 %v1437, 1.0
      %v1593 = vadd.f32 %v1438, 1.0
      %vm1594 = vcmp.ge.f32.partialorder %v1590, 0.0
      %vm1595 = vcmp.ge.f32.partialorder %v1591, 0.0
      %vm1596 = vcmp.ge.f32.partialorder %v1592, 0.0
      %vm1597 = vcmp.ge.f32.partialorder %v1593, 0.0
      %vm1598 = vcmp.lt.f32.partialorder %v1590, 16.0
      %vm1599 = vcmp.lt.f32.partialorder %v1591, 16.0
      %vm1600 = vcmp.lt.f32.partialorder %v1592, 16.0
      %vm1601 = vcmp.lt.f32.partialorder %v1593, 16.0
      %vm1602 = vmand %vm1594, %vm1598
      %vm1603 = vmand %vm1595, %vm1599
      %vm1604 = vmand %vm1596, %vm1600
      %vm1605 = vmand %vm1597, %vm1601
      %v1606 = vsel %vm1602, 1, 0
      %v1607 = vsel %vm1603, 1, 0
      %v1608 = vsel %vm1604, 1, 0
      %v1609 = vsel %vm1605, 1, 0
      %1610 = vset.pattern.permute.xlu0 0
      %1611 = vperm.xlu0 %1610, %v1606
      %v1612 = vpop.permute.xlu0 %1611
      %1613 = vset.pattern.permute.xlu0 0
      %1614 = vperm.xlu0 %1613, %v1607
      %v1615 = vpop.permute.xlu0 %1614
      %1616 = vset.pattern.permute.xlu0 0
      %1617 = vperm.xlu0 %1616, %v1608
      %v1618 = vpop.permute.xlu0 %1617
      %1619 = vset.pattern.permute.xlu0 0
      %1620 = vperm.xlu0 %1619, %v1609
      %v1621 = vpop.permute.xlu0 %1620
      %vm1622 = vcmp.eq.s32.totalorder %v1612, 1
      %vm1623 = vcmp.eq.s32.totalorder %v1615, 1
      %vm1624 = vcmp.eq.s32.totalorder %v1618, 1
      %vm1625 = vcmp.eq.s32.totalorder %v1621, 1
      %v1626 = vsel %vm1622, %v1588, 0.0
      %v1627 = vsel %vm1623, %v1587, 0.0
      %v1628 = vsel %vm1624, %v1586, 0.0
      %v1629 = vsel %vm1625, %v1589, 0.0
      %s1630 = scalar_lea.vmem %s703, 64
      %v1631 = vld [vmem:[%s1630] sm:$0xff]
      %v1632 = vld [vmem:[%s1630 + $0x8] sm:$0xff]
      %v1633 = vld [vmem:[%s1630 + $0x10] sm:$0xff]
      %v1634 = vld [vmem:[%s1630 + $0x18] sm:$0xff]
      %v1636 = vsel %vm784, %v1626, 0
      %v1639 = vsel %vm784, %v1627, 0
      %v1642 = vsel %vm784, %v1628, 0
      %v1645 = vsel %vm784, %v1629, 0
      %1647 = vmatpush.msra.mxu0 0.0
      %1648 = vmatpush.msra.mxu0 0.0
      %1649 = vmatpush.msra.mxu0 0.0
      %1650 = vmatpush.msra.mxu0 0.0
      %1651 = vmatpush.msra.mxu0 0.0
      %1652 = vmatpush.msra.mxu0 0.0
      %1653 = vmatpush.msra.mxu0 0.0
      %1654 = vmatpush.msra.mxu0 0.0
      %1655 = vmatpush.msra.mxu0 0.0
      %1656 = vmatpush.msra.mxu0 0.0
      %1657 = vmatpush.msra.mxu0 0.0
      %1658 = vmatpush.msra.mxu0 0.0
      %1659 = vmatpush.msra.mxu0 %v1634
      %1660 = vmatpush.msra.mxu0 %v1633
      %1661 = vmatpush.msra.mxu0 %v1632
      %1662 = vmatpush.msra.mxu0 %v1631
      %1663 = vmatmul.f32.gmra.mxu0 %v1636
      %v1664 = vpop.f32.mrf.mxu0
      %v1665 = vadd.f32 0.0, %v1664
      %1666 = vmatmul.f32.gmra.mxu0 %v1639
      %v1667 = vpop.f32.mrf.mxu0
      %v1668 = vadd.f32 0.0, %v1667
      %1669 = vmatmul.f32.gmra.mxu0 %v1642
      %v1670 = vpop.f32.mrf.mxu0
      %v1671 = vadd.f32 0.0, %v1670
      %1672 = vmatmul.f32.gmra.mxu0 %v1645
      %v1673 = vpop.f32.mrf.mxu0
      %v1674 = vadd.f32 0.0, %v1673
      %1675 = vdwg.mxu0
      %v1676 = vadd.f32 %v1570, %v1665
      %v1677 = vadd.f32 %v1573, %v1668
      %v1678 = vadd.f32 %v1576, %v1671
      %v1679 = vadd.f32 %v1579, %v1674
      %v1680 = vld [vmem:[%s706] sm:$0x1]
      %v1682 = vperm.slane %v1680, 0
      %v1684 = vadd.f32 %v1676, %v1682
      %v1685 = vadd.f32 %v1677, %v1682
      %v1686 = vadd.f32 %v1678, %v1682
      %v1687 = vadd.f32 %v1679, %v1682
      %v1688 = vmax.f32 %v1684, 0.0
      %v1689 = vmax.f32 %v1685, 0.0
      %v1690 = vmax.f32 %v1686, 0.0
      %v1691 = vmax.f32 %v1687, 0.0
      %s1692 = scalar_lea.vmem %s711, 64
      %v1693 = vld [vmem:[%s1692] sm:$0xff]
      %v1694 = vld [vmem:[%s1692 + $0x8] sm:$0xff]
      %v1695 = vld [vmem:[%s1692 + $0x10] sm:$0xff]
      %v1696 = vld [vmem:[%s1692 + $0x18] sm:$0xff]
      %v1697 = vld [vmem:[%s1692 + $0x20] sm:$0xff]
      %v1698 = vld [vmem:[%s1692 + $0x28] sm:$0xff]
      %v1699 = vld [vmem:[%s1692 + $0x30] sm:$0xff]
      %v1700 = vld [vmem:[%s1692 + $0x38] sm:$0xff]
      %v1701 = vrot.slane %v1688, 7
      %v1702 = vrot.slane %v1689, 7
      %v1703 = vrot.slane %v1690, 7
      %v1704 = vrot.slane %v1691, 7
      %v1705 = vsel %vm1450, %v1703, %v1704
      %v1706 = vsel %vm1450, %v1702, %v1703
      %v1707 = vsel %vm1450, %v1701, %v1702
      %v1708 = vsel %vm1450, %v1704, %v1701
      %v1709 = vsel %vm1487, %v1708, 0.0
      %v1710 = vsel %vm1488, %v1707, 0.0
      %v1711 = vsel %vm1489, %v1706, 0.0
      %v1712 = vsel %vm1490, %v1705, 0.0
      %v1713 = vld [vmem:[%s711] sm:$0xff]
      %v1714 = vld [vmem:[%s711 + $0x8] sm:$0xff]
      %v1715 = vld [vmem:[%s711 + $0x10] sm:$0xff]
      %v1716 = vld [vmem:[%s711 + $0x18] sm:$0xff]
      %v1717 = vld [vmem:[%s711 + $0x20] sm:$0xff]
      %v1718 = vld [vmem:[%s711 + $0x28] sm:$0xff]
      %v1719 = vld [vmem:[%s711 + $0x30] sm:$0xff]
      %v1720 = vld [vmem:[%s711 + $0x38] sm:$0xff]
      %vm1721 = vcmask 523264
      %v1723 = vsel %vm1721, %v1709, 0
      %v1726 = vsel %vm1721, %v1710, 0
      %v1729 = vsel %vm1721, %v1711, 0
      %v1732 = vsel %vm1721, %v1712, 0
      %1734 = vmatpush.msra.mxu0 0.0
      %1735 = vmatpush.msra.mxu0 0.0
      %1736 = vmatpush.msra.mxu0 0.0
      %1737 = vmatpush.msra.mxu0 0.0
      %1738 = vmatpush.msra.mxu0 0.0
      %1739 = vmatpush.msra.mxu0 0.0
      %1740 = vmatpush.msra.mxu0 0.0
      %1741 = vmatpush.msra.mxu0 0.0
      %1742 = vmatpush.msra.mxu0 %v1720
      %1743 = vmatpush.msra.mxu0 %v1719
      %1744 = vmatpush.msra.mxu0 %v1718
      %1745 = vmatpush.msra.mxu0 %v1717
      %1746 = vmatpush.msra.mxu0 %v1716
      %1747 = vmatpush.msra.mxu0 %v1715
      %1748 = vmatpush.msra.mxu0 %v1714
      %1749 = vmatpush.msra.mxu0 %v1713
      %1750 = vmatmul.f32.gmra.mxu0 %v1723
      %v1751 = vpop.f32.mrf.mxu0
      %v1752 = vadd.f32 0.0, %v1751
      %1753 = vmatmul.f32.gmra.mxu0 %v1726
      %v1754 = vpop.f32.mrf.mxu0
      %v1755 = vadd.f32 0.0, %v1754
      %1756 = vmatmul.f32.gmra.mxu0 %v1729
      %v1757 = vpop.f32.mrf.mxu0
      %v1758 = vadd.f32 0.0, %v1757
      %1759 = vmatmul.f32.gmra.mxu0 %v1732
      %v1760 = vpop.f32.mrf.mxu0
      %v1761 = vadd.f32 0.0, %v1760
      %1762 = vdwg.mxu0
      %v1764 = vsel %vm1721, %v1688, 0
      %v1767 = vsel %vm1721, %v1689, 0
      %v1770 = vsel %vm1721, %v1690, 0
      %v1773 = vsel %vm1721, %v1691, 0
      %1775 = vmatpush.msra.mxu0 0.0
      %1776 = vmatpush.msra.mxu0 0.0
      %1777 = vmatpush.msra.mxu0 0.0
      %1778 = vmatpush.msra.mxu0 0.0
      %1779 = vmatpush.msra.mxu0 0.0
      %1780 = vmatpush.msra.mxu0 0.0
      %1781 = vmatpush.msra.mxu0 0.0
      %1782 = vmatpush.msra.mxu0 0.0
      %1783 = vmatpush.msra.mxu0 %v1700
      %1784 = vmatpush.msra.mxu0 %v1699
      %1785 = vmatpush.msra.mxu0 %v1698
      %1786 = vmatpush.msra.mxu0 %v1697
      %1787 = vmatpush.msra.mxu0 %v1696
      %1788 = vmatpush.msra.mxu0 %v1695
      %1789 = vmatpush.msra.mxu0 %v1694
      %1790 = vmatpush.msra.mxu0 %v1693
      %1791 = vmatmul.f32.gmra.mxu0 %v1764
      %v1792 = vpop.f32.mrf.mxu0
      %v1793 = vadd.f32 %v1752, %v1792
      %1794 = vmatmul.f32.gmra.mxu0 %v1767
      %v1795 = vpop.f32.mrf.mxu0
      %v1796 = vadd.f32 %v1755, %v1795
      %1797 = vmatmul.f32.gmra.mxu0 %v1770
      %v1798 = vpop.f32.mrf.mxu0
      %v1799 = vadd.f32 %v1758, %v1798
      %1800 = vmatmul.f32.gmra.mxu0 %v1773
      %v1801 = vpop.f32.mrf.mxu0
      %v1802 = vadd.f32 %v1761, %v1801
      %1803 = vdwg.mxu0
      %v1804 = vrot.slane %v1688, 1
      %v1805 = vrot.slane %v1689, 1
      %v1806 = vrot.slane %v1690, 1
      %v1807 = vrot.slane %v1691, 1
      %v1808 = vsel %vm1585, %v1806, %v1807
      %v1809 = vsel %vm1585, %v1805, %v1806
      %v1810 = vsel %vm1585, %v1804, %v1805
      %v1811 = vsel %vm1585, %v1807, %v1804
      %v1812 = vsel %vm1622, %v1810, 0.0
      %v1813 = vsel %vm1623, %v1809, 0.0
      %v1814 = vsel %vm1624, %v1808, 0.0
      %v1815 = vsel %vm1625, %v1811, 0.0
      %s1816 = scalar_lea.vmem %s711, 128
      %v1817 = vld [vmem:[%s1816] sm:$0xff]
      %v1818 = vld [vmem:[%s1816 + $0x8] sm:$0xff]
      %v1819 = vld [vmem:[%s1816 + $0x10] sm:$0xff]
      %v1820 = vld [vmem:[%s1816 + $0x18] sm:$0xff]
      %v1821 = vld [vmem:[%s1816 + $0x20] sm:$0xff]
      %v1822 = vld [vmem:[%s1816 + $0x28] sm:$0xff]
      %v1823 = vld [vmem:[%s1816 + $0x30] sm:$0xff]
      %v1824 = vld [vmem:[%s1816 + $0x38] sm:$0xff]
      %v1826 = vsel %vm1721, %v1812, 0
      %v1829 = vsel %vm1721, %v1813, 0
      %v1832 = vsel %vm1721, %v1814, 0
      %v1835 = vsel %vm1721, %v1815, 0
      %1837 = vmatpush.msra.mxu0 0.0
      %1838 = vmatpush.msra.mxu0 0.0
      %1839 = vmatpush.msra.mxu0 0.0
      %1840 = vmatpush.msra.mxu0 0.0
      %1841 = vmatpush.msra.mxu0 0.0
      %1842 = vmatpush.msra.mxu0 0.0
      %1843 = vmatpush.msra.mxu0 0.0
      %1844 = vmatpush.msra.mxu0 0.0
      %1845 = vmatpush.msra.mxu0 %v1824
      %1846 = vmatpush.msra.mxu0 %v1823
      %1847 = vmatpush.msra.mxu0 %v1822
      %1848 = vmatpush.msra.mxu0 %v1821
      %1849 = vmatpush.msra.mxu0 %v1820
      %1850 = vmatpush.msra.mxu0 %v1819
      %1851 = vmatpush.msra.mxu0 %v1818
      %1852 = vmatpush.msra.mxu0 %v1817
      %1853 = vmatmul.f32.gmra.mxu0 %v1826
      %v1854 = vpop.f32.mrf.mxu0
      %v1855 = vadd.f32 0.0, %v1854
      %1856 = vmatmul.f32.gmra.mxu0 %v1829
      %v1857 = vpop.f32.mrf.mxu0
      %v1858 = vadd.f32 0.0, %v1857
      %1859 = vmatmul.f32.gmra.mxu0 %v1832
      %v1860 = vpop.f32.mrf.mxu0
      %v1861 = vadd.f32 0.0, %v1860
      %1862 = vmatmul.f32.gmra.mxu0 %v1835
      %v1863 = vpop.f32.mrf.mxu0
      %v1864 = vadd.f32 0.0, %v1863
      %1865 = vdwg.mxu0
      %v1866 = vadd.f32 %v1793, %v1855
      %v1867 = vadd.f32 %v1796, %v1858
      %v1868 = vadd.f32 %v1799, %v1861
      %v1869 = vadd.f32 %v1802, %v1864
      %v1870 = vld [vmem:[%s714] sm:$0x1]
      %v1872 = vperm.slane %v1870, 0
      %v1874 = vadd.f32 %v1866, %v1872
      %v1875 = vadd.f32 %v1867, %v1872
      %v1876 = vadd.f32 %v1868, %v1872
      %v1877 = vadd.f32 %v1869, %v1872
      %v1878 = vadd.f32 %v1431, %v1874
      %v1879 = vadd.f32 %v1432, %v1875
      %v1880 = vadd.f32 %v1433, %v1876
      %v1881 = vadd.f32 %v1434, %v1877
      %v1882 = vld [vmem:[%s717] sm:$0x1]
      %v1883 = vld [vmem:[%s720] sm:$0x1]
      %v1884 = vsel %vm784, %v1878, 0.0
      %1885 = vadd.xlane.f32.xlu0 %v1884
      %v1886 = vpop.xlane.xlu0 %1885
      %v1887 = vsel %vm784, %v1879, 0.0
      %1888 = vadd.xlane.f32.xlu0 %v1887
      %v1889 = vpop.xlane.xlu0 %1888
      %v1890 = vsel %vm784, %v1880, 0.0
      %1891 = vadd.xlane.f32.xlu0 %v1890
      %v1892 = vpop.xlane.xlu0 %1891
      %v1893 = vsel %vm784, %v1881, 0.0
      %1894 = vadd.xlane.f32.xlu0 %v1893
      %v1895 = vpop.xlane.xlu0 %1894
      %v1896 = vmul.f32 %v1886, %v1320
      %v1897 = vmul.f32 %v1889, %v1320
      %v1898 = vmul.f32 %v1892, %v1320
      %v1899 = vmul.f32 %v1895, %v1320
      %v1900 = vsub.f32 %v1878, %v1896
      %v1901 = vsub.f32 %v1879, %v1897
      %v1902 = vsub.f32 %v1880, %v1898
      %v1903 = vsub.f32 %v1881, %v1899
      %v1904 = vmul.f32 %v1900, %v1900
      %v1905 = vmul.f32 %v1901, %v1901
      %v1906 = vmul.f32 %v1902, %v1902
      %v1907 = vmul.f32 %v1903, %v1903
      %v1908 = vsel %vm784, %v1904, 0.0
      %1909 = vadd.xlane.f32.xlu0 %v1908
      %v1910 = vpop.xlane.xlu0 %1909
      %v1911 = vsel %vm784, %v1905, 0.0
      %1912 = vadd.xlane.f32.xlu0 %v1911
      %v1913 = vpop.xlane.xlu0 %1912
      %v1914 = vsel %vm784, %v1906, 0.0
      %1915 = vadd.xlane.f32.xlu0 %v1914
      %v1916 = vpop.xlane.xlu0 %1915
      %v1917 = vsel %vm784, %v1907, 0.0
      %1918 = vadd.xlane.f32.xlu0 %v1917
      %v1919 = vpop.xlane.xlu0 %1918
      %v1920 = vmul.f32 %v1910, %v1320
      %v1921 = vmul.f32 %v1913, %v1320
      %v1922 = vmul.f32 %v1916, %v1320
      %v1923 = vmul.f32 %v1919, %v1320
      %v1924 = vadd.f32 %v1920, 1e-05
      %v1925 = vadd.f32 %v1921, 1e-05
      %v1926 = vadd.f32 %v1922, 1e-05
      %v1927 = vadd.f32 %v1923, 1e-05
      %v1928 = vrsqrt.pop %v1924
      %v1929 = vmul.f32 %v1928, %v1924
      %v1930 = vmul.f32 %v1929, %v1928
      %v1931 = vmul.f32 0.5, %v1930
      %v1932 = vsub.f32 1.5, %v1931
      %v1933 = vmul.f32 %v1928, %v1932
      %vm1934 = vweird.f32 %v1924
      %vm1935 = vweird.f32 %v1928
      %vm1936 = vmor %vm1934, %vm1935
      %v1937 = vsel %vm1936, %v1928, %v1933
      %v1938 = vrsqrt.pop %v1925
      %v1939 = vmul.f32 %v1938, %v1925
      %v1940 = vmul.f32 %v1939, %v1938
      %v1941 = vmul.f32 0.5, %v1940
      %v1942 = vsub.f32 1.5, %v1941
      %v1943 = vmul.f32 %v1938, %v1942
      %vm1944 = vweird.f32 %v1925
      %vm1945 = vweird.f32 %v1938
      %vm1946 = vmor %vm1944, %vm1945
      %v1947 = vsel %vm1946, %v1938, %v1943
      %v1948 = vrsqrt.pop %v1926
      %v1949 = vmul.f32 %v1948, %v1926
      %v1950 = vmul.f32 %v1949, %v1948
      %v1951 = vmul.f32 0.5, %v1950
      %v1952 = vsub.f32 1.5, %v1951
      %v1953 = vmul.f32 %v1948, %v1952
      %vm1954 = vweird.f32 %v1926
      %vm1955 = vweird.f32 %v1948
      %vm1956 = vmor %vm1954, %vm1955
      %v1957 = vsel %vm1956, %v1948, %v1953
      %v1958 = vrsqrt.pop %v1927
      %v1959 = vmul.f32 %v1958, %v1927
      %v1960 = vmul.f32 %v1959, %v1958
      %v1961 = vmul.f32 0.5, %v1960
      %v1962 = vsub.f32 1.5, %v1961
      %v1963 = vmul.f32 %v1958, %v1962
      %vm1964 = vweird.f32 %v1927
      %vm1965 = vweird.f32 %v1958
      %vm1966 = vmor %vm1964, %vm1965
      %v1967 = vsel %vm1966, %v1958, %v1963
      %v1968 = vmul.f32 %v1900, %v1937
      %v1969 = vmul.f32 %v1901, %v1947
      %v1970 = vmul.f32 %v1902, %v1957
      %v1971 = vmul.f32 %v1903, %v1967
      %v1973 = vperm.slane %v1882, 0
      %v1975 = vmul.f32 %v1968, %v1973
      %v1976 = vmul.f32 %v1969, %v1973
      %v1977 = vmul.f32 %v1970, %v1973
      %v1978 = vmul.f32 %v1971, %v1973
      %v1980 = vperm.slane %v1883, 0
      %v1982 = vadd.f32 %v1975, %v1980
      %v1983 = vadd.f32 %v1976, %v1980
      %v1984 = vadd.f32 %v1977, %v1980
      %v1985 = vadd.f32 %v1978, %v1980
      %v1986 = vmul.f32 %v1982, %v1414
      %v1987 = vmul.f32 %v1983, %v1419
      %v1988 = vmul.f32 %v1984, %v1424
      %v1989 = vmul.f32 %v1985, %v1429
      %1990 = vst.msk [vmem:[#allocation2] sm:$0xff] %vm784, %v1986
      %1991 = vst.msk [vmem:[#allocation2 + $0x8] sm:$0xff] %vm784, %v1987
      %1992 = vst.msk [vmem:[#allocation2 + $0x10] sm:$0xff] %vm784, %v1988
      %1993 = vst.msk [vmem:[#allocation2 + $0x18] sm:$0xff] %vm784, %v1989
      %p1994 = scmp.eq.s32.totalorder %s31, 1
      // Predicated region
      $region97: #{fftransformer_forward.1} parent=91 // pred_check
        %p1995 = pneg %p1994
      $region98: #{fftransformer_forward.1} parent=91 // pred_check_branch
        %1997 = sbr.rel (%p1995) target = $region100
      $region99: #{fftransformer_forward.1} parent=91 // pred_region
        %v1998 = vld [vmem:[%s16] sm:$0xff]
        %v1999 = vld [vmem:[%s16 + $0x8] sm:$0xff]
        %v2000 = vld [vmem:[%s16 + $0x10] sm:$0xff]
        %v2001 = vld [vmem:[%s16 + $0x18] sm:$0xff]
        %v2002 = vld [vmem:[#allocation3] sm:$0x1]
        %v2004 = vperm.slane %v2002, 0
        %v2007 = vsel %vm784, %v1986, 0
        %v2010 = vsel %vm784, %v1987, 0
        %v2013 = vsel %vm784, %v1988, 0
        %v2016 = vsel %vm784, %v1989, 0
        %2018 = vmatpush.msra.mxu0 0.0
        %2019 = vmatpush.msra.mxu0 0.0
        %2020 = vmatpush.msra.mxu0 0.0
        %2021 = vmatpush.msra.mxu0 0.0
        %2022 = vmatpush.msra.mxu0 0.0
        %2023 = vmatpush.msra.mxu0 0.0
        %2024 = vmatpush.msra.mxu0 0.0
        %2025 = vmatpush.msra.mxu0 0.0
        %2026 = vmatpush.msra.mxu0 0.0
        %2027 = vmatpush.msra.mxu0 0.0
        %2028 = vmatpush.msra.mxu0 0.0
        %2029 = vmatpush.msra.mxu0 0.0
        %2030 = vmatpush.msra.mxu0 %v2001
        %2031 = vmatpush.msra.mxu0 %v2000
        %2032 = vmatpush.msra.mxu0 %v1999
        %2033 = vmatpush.msra.mxu0 %v1998
        %2034 = vmatmul.f32.gmra.mxu0 %v2007
        %v2035 = vpop.f32.mrf.mxu0
        %v2036 = vadd.f32 %v2004, %v2035
        %2037 = vmatmul.f32.gmra.mxu0 %v2010
        %v2038 = vpop.f32.mrf.mxu0
        %v2039 = vadd.f32 %v2004, %v2038
        %2040 = vmatmul.f32.gmra.mxu0 %v2013
        %v2041 = vpop.f32.mrf.mxu0
        %v2042 = vadd.f32 %v2004, %v2041
        %2043 = vmatmul.f32.gmra.mxu0 %v2016
        %v2044 = vpop.f32.mrf.mxu0
        %v2045 = vadd.f32 %v2004, %v2044
        %2046 = vdwg.mxu0
        %vm2047 = vcmask 7168
        %2048 = vst.msk [vmem:[%s18] sm:$0xff] %vm2047, %v2036
        %2049 = vst.msk [vmem:[%s18 + $0x8] sm:$0xff] %vm2047, %v2039
        %2050 = vst.msk [vmem:[%s18 + $0x10] sm:$0xff] %vm2047, %v2042
        %2051 = vst.msk [vmem:[%s18 + $0x18] sm:$0xff] %vm2047, %v2045
      $region100: #{fftransformer_forward.1} parent=91 // pred_fallthru
        _
      // Predicated region
      $region101: #{fftransformer_forward.1} parent=91 // pred_check
        %p2052 = pneg %p477
      $region102: #{fftransformer_forward.1} parent=91 // pred_check_branch
        %2054 = sbr.rel (%p2052) target = $region104
      $region103: #{fftransformer_forward.1} parent=91 // pred_region
        _
      $region104: #{fftransformer_forward.1} parent=91 // pred_fallthru
        _
      // Predicated region
      $region105: #{fftransformer_forward.1} parent=91 // pred_check
        %p2055 = pneg %p477
      $region106: #{fftransformer_forward.1} parent=91 // pred_check_branch
        %2057 = sbr.rel (%p2055) target = $region108
      $region107: #{fftransformer_forward.1} parent=91 // pred_region
        _
      $region108: #{fftransformer_forward.1} parent=91 // pred_fallthru
        _
    $region92: #{fftransformer_forward.1} parent=5 // pred_fallthru
      _
    %p2058 = scmp.le.s32.totalorder 2, %s26
    // Predicated region
    $region109: #{fftransformer_forward.1} parent=5 // pred_check
      %p2059 = pneg %p2058
    $region110: #{fftransformer_forward.1} parent=5 // pred_check_branch
      %2061 = sbr.rel (%p2059) target = $region112
    $region111: #{fftransformer_forward.1} parent=5 // pred_region
      %s2062 = ssub.s32 %s26, 2
    $region112: #{fftransformer_forward.1} parent=5 // pred_fallthru
      _
  $region6: #{fftransformer_forward.1} parent=0 // loop_footer
    %s30 = sadd.s32 1, %s26
  $region7: #{fftransformer_forward.1} parent=0 // loop_footer_branch
    %25 = sbr.rel target = $region3
  $region8: #{fftransformer_forward.1} parent=0 // loop_exit
    _

</llo_original>
